<compile_context>
chip_gen: v7x
topology: tpu7x:2x2x1
jax: 0.10.0
libtpu: 0.0.40
codegen_flags: <defaults>
</compile_context>

<pallas_src>
import functools

import jax
import jax.numpy as jnp
from jax import lax
from jax.experimental import pallas as pl
from jax.experimental.pallas import tpu as pltpu


# ----------------------------- kernel -----------------------------
def _yolo_loss_kernel(pred_ref, tgt_ref, out_ref, *, num_classes, chunk,
                      nchunks, unroll):
    i = pl.program_id(1)

    # The output block index ignores the (arbitrary) anchor-block axis, so the
    # block stays resident in VMEM across it: zero once, accumulate in place.
    @pl.when(i == 0)
    def _():
        out_ref[...] = jnp.zeros_like(out_ref)

    def chunk_body(j, carry):
        box_acc, cls_acc, dfl_acc = carry
        off = pl.multiple_of(j * chunk, chunk)

        # ---- group 1: box logits + targets (IoU + DFL) ----
        box = pred_ref[:, :4, pl.ds(off, chunk), :].astype(jnp.float32)
        tgt = tgt_ref[:, :, pl.ds(off, chunk), :].astype(jnp.float32)

        b1x1, b1y1, b1x2, b1y2 = (box[:, k] for k in range(4))
        b2x1, b2y1, b2x2, b2y2 = (tgt[:, k] for k in range(4))
        iw = jnp.maximum(jnp.minimum(b1x2, b2x2) - jnp.maximum(b1x1, b2x1), 0.0)
        ih = jnp.maximum(jnp.minimum(b1y2, b2y2) - jnp.maximum(b1y1, b2y1), 0.0)
        inter = iw * ih
        a1 = (b1x2 - b1x1) * (b1y2 - b1y1)
        a2 = (b2x2 - b2x1) * (b2y2 - b2y1)
        # Approx reciprocal stays on the EUP slot; error ~2^-12 << tolerance
        # (whenever inter > 0 both boxes are proper, so union >= inter > 0).
        iou = inter * pl.reciprocal(a1 + a2 - inter + 1e-7, approx=True)

        # ---- DFL: softplus computed once over all 4 box channels ----
        sp_box = jnp.log1p(jnp.exp(-jnp.abs(box)))          # (B, 4, chunk, 128)
        p_left = box[:, :3]
        p_right = box[:, 1:4]
        # TODO(synk): torch's DFL as written mixes 3-channel pred slices with
        # the full 4-channel targets (shape-inconsistent under strict torch
        # BCE); we slice targets[:, :3] so shapes line up, same formula.
        t = tgt[:, :3]
        t_left = jnp.floor(t)
        w_right = t - t_left
        bce_l = jnp.maximum(p_left, 0.0) - p_left * t_left + sp_box[:, :3]
        # t_right = t_left + 1 folded into the BCE expression.
        bce_r = (jnp.maximum(p_right, 0.0) - p_right * t_left - p_right
                 + sp_box[:, 1:4])
        # bce_l*w_left + bce_r*w_right with w_left = 1 - w_right:
        dfl = bce_l + (bce_r - bce_l) * w_right             # (B, 3, chunk, 128)

        # ---- group 2: cls logits vs (same) targets: BCE-with-logits ----
        scores = pred_ref[:, 4:4 + num_classes,
                          pl.ds(off, chunk), :].astype(jnp.float32)
        sp_cls = jnp.log1p(jnp.exp(-jnp.abs(scores)))
        cls = jnp.maximum(scores, 0.0) - scores * tgt + sp_cls

        # Reductions only over leading (non-tiled) axes: pure VPU vreg adds.
        return (box_acc + jnp.sum(iou, axis=0),
                cls_acc + jnp.sum(cls, axis=(0, 1)),
                dfl_acc + jnp.sum(dfl, axis=(0, 1)))

    zeros = jnp.zeros((chunk, 128), jnp.float32)
    box_s, cls_s, dfl_s = lax.fori_loop(0, nchunks, chunk_body,
                                        (zeros, zeros, zeros), unroll=unroll)
    out_ref[0, 0] = out_ref[0, 0] + box_s
    out_ref[0, 1] = out_ref[0, 1] + cls_s
    out_ref[0, 2] = out_ref[0, 2] + dfl_s


# ----------------------------- wrapper -----------------------------
def _num_tensorcores():
    """Conservative TensorCores-per-device (2 only on known multi-TC chips)."""
    try:
        kind = jax.devices()[0].device_kind.lower()
    except Exception:
        return 1
    if "lite" in kind or "v5e" in kind or "v6e" in kind:
        return 1
    if any(s in kind for s in ("v7", "7x", "v4", "v5p")):
        return 2
    return 1


def _vmem_budget_bytes():
    """~75% of this generation's per-core VMEM (96 MiB v5e/v6e, 48 MiB v7x)."""
    try:
        cap = int(pltpu.get_tpu_info().vmem_capacity_bytes)
    except Exception:
        cap = 64 * 2 ** 20          # conservative fallback (v7x per-TC)
    return max(16 * 2 ** 20, (cap * 3) // 4)


def _choose_tiling(S, max_block_sublanes, sublane_multiple, bytes_per_sublane,
                   vmem_budget, ncores_pref):
    """Pick (ncores, block_sublanes ts, steps_per_core) for the anchor axis."""
    # Largest ts whose double-buffered input blocks fit the VMEM budget.
    fit = int(vmem_budget // (2 * bytes_per_sublane))
    fit = max(sublane_multiple, (fit // sublane_multiple) * sublane_multiple)
    cap = min(max_block_sublanes, fit)
    for ncores in dict.fromkeys((max(1, ncores_pref), 1)):
        if S % ncores:
            continue
        s_per = S // ncores
        for ts in range(min(s_per, cap), 0, -1):
            # (sublane, lane) block dims must be tile-aligned or full-extent.
            if s_per % ts == 0 and (ts % sublane_multiple == 0 or ts == S):
                return ncores, ts, s_per // ts
    return 1, S, 1


def yolov8_loss(pred, targets, *, num_classes, box_gain=7.5, cls_gain=0.5,
                dfl_gain=1.5, max_block_sublanes=512):
    B, C, A = pred.shape
    assert C == 4 + num_classes
    assert targets.shape == (B, 4, A)
    # The torch module's cls BCE needs pred_scores and targets to share a
    # shape, which only holds when num_classes == 4.
    assert num_classes == 4
    assert A % 128 == 0, "anchor count must be a multiple of 128"

    S = A // 128
    p_item = jnp.dtype(pred.dtype).itemsize
    t_item = jnp.dtype(targets.dtype).itemsize
    sublane_multiple = max(8, 32 // min(p_item, t_item))   # f32->8, bf16->16
    bytes_per_sublane = B * (C * p_item + 4 * t_item) * 128
    vmem_budget = _vmem_budget_bytes()
    ncores, ts, g1 = _choose_tiling(S, max_block_sublanes, sublane_multiple,
                                    bytes_per_sublane, vmem_budget,
                                    _num_tensorcores())
    chunk = sublane_multiple if ts % sublane_multiple == 0 else ts
    nchunks = ts // chunk
    unroll = True if nchunks <= 8 else 8

    pred4 = pred.reshape(B, C, S, 128)      # free views in HBM
    tgt4 = targets.reshape(B, 4, S, 128)

    kernel = functools.partial(_yolo_loss_kernel, num_classes=num_classes,
                               chunk=chunk, nchunks=nchunks, unroll=unroll)

    partial_sums = pl.pallas_call(
        kernel,
        out_shape=jax.ShapeDtypeStruct((ncores, 3, chunk, 128), jnp.float32),
        grid=(ncores, g1),
        in_specs=[
            pl.BlockSpec((B, C, ts, 128), lambda c, i: (0, 0, c * g1 + i, 0)),
            pl.BlockSpec((B, 4, ts, 128), lambda c, i: (0, 0, c * g1 + i, 0)),
        ],
        out_specs=pl.BlockSpec((1, 3, chunk, 128), lambda c, i: (c, 0, 0, 0)),
        compiler_params=pltpu.CompilerParams(
            dimension_semantics=("parallel", "arbitrary"),
            vmem_limit_bytes=int(vmem_budget)),
    )(pred4, tgt4)

    sums = jnp.sum(partial_sums, axis=(0, 2, 3))            # (3,)
    box_loss = 1.0 - sums[0] / (B * A)                      # 1 - mean(iou)
    cls_loss = sums[1] / (B * num_classes * A)
    dfl_loss = sums[2] / (B * 3 * A)
    comps = jnp.stack([box_loss, cls_loss, dfl_loss])
    total = box_gain * box_loss + cls_gain * cls_loss + dfl_gain * dfl_loss
    return total, comps


# ------------- pure-JAX reference (mirrors the PyTorch forward) -------------
def _bce_with_logits(x, z):
    return jnp.maximum(x, 0.0) - x * z + jnp.log1p(jnp.exp(-jnp.abs(x)))


def yolov8_loss_ref(pred, targets, *, num_classes, box_gain=7.5, cls_gain=0.5,
                    dfl_gain=1.5):
    pred = pred.astype(jnp.float32)
    targets = targets.astype(jnp.float32)
    pred_distri = pred[:, :4, :]
    pred_scores = pred[:, 4:4 + num_classes, :]

    b1 = [pred_distri[:, k:k + 1, :] for k in range(4)]
    b2 = [targets[:, k:k + 1, :] for k in range(4)]
    inter = (jnp.maximum(jnp.minimum(b1[2], b2[2]) - jnp.maximum(b1[0], b2[0]), 0.0) *
             jnp.maximum(jnp.minimum(b1[3], b2[3]) - jnp.maximum(b1[1], b2[1]), 0.0))
    a1 = (b1[2] - b1[0]) * (b1[3] - b1[1])
    a2 = (b2[2] - b2[0]) * (b2[3] - b2[1])
    iou = inter / (a1 + a2 - inter + 1e-7)
    box_loss = 1.0 - jnp.mean(iou)

    cls_loss = jnp.mean(_bce_with_logits(pred_scores, targets))

    p_left, p_right = pred_distri[:, :-1, :], pred_distri[:, 1:, :]
    t = targets[:, :-1, :]
    t_left = jnp.floor(t)
    t_right = t_left + 1.0
    dfl_loss = jnp.mean(_bce_with_logits(p_left, t_left) * (t_right - t) +
                        _bce_with_logits(p_right, t_right) * (t - t_left))

    total = box_gain * box_loss + cls_gain * cls_loss + dfl_gain * dfl_loss
    return total, jnp.stack([box_loss, cls_loss, dfl_loss])


if __name__ == "__main__":
    num_classes = 4
    B, A = 2, 4096
    C = 4 + num_classes            # = 8

    key = jax.random.PRNGKey(0)
    k1, k2 = jax.random.split(key)
    pred = jax.random.normal(k1, (B, C, A), dtype=jnp.float32)
    targets = jax.random.uniform(k2, (B, 4, A), dtype=jnp.float32,
                                 minval=0.0, maxval=4.0)

    ref_total, ref_comps = yolov8_loss_ref(pred, targets, num_classes=num_classes)

    # Default config: one large anchor block per core.
    total, comps = yolov8_loss(pred, targets, num_classes=num_classes)
    jax.block_until_ready((total, comps))
    assert jnp.allclose(comps, ref_comps, rtol=1e-3, atol=5e-4), (comps, ref_comps)
    assert jnp.allclose(total, ref_total, rtol=1e-3, atol=5e-3), (total, ref_total)

    # Small blocks -> exercises multi-step accumulation into the resident output.
    total2, comps2 = yolov8_loss(pred, targets, num_classes=num_classes,
                                 max_block_sublanes=8)
    jax.block_until_ready((total2, comps2))
    assert jnp.allclose(comps2, ref_comps, rtol=1e-3, atol=5e-4), (comps2, ref_comps)
    assert jnp.allclose(total2, ref_total, rtol=1e-3, atol=5e-3), (total2, ref_total)

    # bf16 inputs at the pallas_call boundary (kernel upcasts internally).
    pred_bf = pred.astype(jnp.bfloat16)
    tgt_bf = targets.astype(jnp.bfloat16)
    ref_total_bf, ref_comps_bf = yolov8_loss_ref(pred_bf, tgt_bf,
                                                 num_classes=num_classes)
    total_bf, comps_bf = yolov8_loss(pred_bf, tgt_bf, num_classes=num_classes)
    jax.block_until_ready((total_bf, comps_bf))
    assert jnp.allclose(comps_bf, ref_comps_bf, rtol=1e-2, atol=1e-3), (
        comps_bf, ref_comps_bf)

    print("KERNEL_OK")
</pallas_src>

<mosaic_0001>
module attributes {stable_mosaic.version = 11 : i64} {
  func.func @_yolo_loss_kernel(%arg0: i32, %arg1: i32, %arg2: memref<2x8x32x128xf32, #tpu.memory_space<vmem>>, %arg3: memref<2x4x32x128xf32, #tpu.memory_space<vmem>>, %arg4: memref<1x3x8x128xf32, #tpu.memory_space<vmem>>) attributes {dimension_semantics = [#tpu.dimension_semantics<parallel>, #tpu.dimension_semantics<arbitrary>], iteration_bounds = array<i64: 1, 1>, scalar_prefetch = 0 : i64, scratch_operands = 0 : i64, tpu.core_type = #tpu.core_type<tc>, window_params = [{transform_indices = @transform_0, window_bounds = array<i64: 2, 8, 32, 128>}, {transform_indices = @transform_1, window_bounds = array<i64: 2, 4, 32, 128>}, {transform_indices = @transform_2, window_bounds = array<i64: 1, 3, 8, 128>}]} {
    %c0_i32 = arith.constant 0 : i32
    %0 = arith.cmpi eq, %arg1, %c0_i32 : i32
    %1 = arith.extui %0 : i1 to i32
    %c0_i32_0 = arith.constant 0 : i32
    %2 = arith.cmpi ne, %1, %c0_i32_0 : i32
    scf.if %2 {
      %cst_105 = arith.constant 0.000000e+00 : f32
      %378 = vector.broadcast %cst_105 : f32 to vector<1x3x8x128xf32>
      %c0_106 = arith.constant 0 : index
      %c0_107 = arith.constant 0 : index
      %c0_108 = arith.constant 0 : index
      %c0_109 = arith.constant 0 : index
      %379 = vector.load %arg4[%c0_106, %c0_107, %c0_108, %c0_109] : memref<1x3x8x128xf32, #tpu.memory_space<vmem>>, vector<1x3x8x128xf32>
      tpu.vector_store %arg4[%c0_106, %c0_107, %c0_108, %c0_109], %378 {strides = array<i32>} : memref<1x3x8x128xf32, #tpu.memory_space<vmem>>, vector<1x3x8x128xf32>,
    } else {
    }
    %cst = arith.constant 0.000000e+00 : f32
    %3 = vector.broadcast %cst : f32 to vector<8x128xf32>
    %c0_i32_1 = arith.constant 0 : i32
    %c8_i32 = arith.constant 8 : i32
    %4 = arith.muli %c0_i32_1, %c8_i32 : i32
    %5 = tpu.assume_multiple %4, 8 : i32
    %c0 = arith.constant 0 : index
    %c0_2 = arith.constant 0 : index
    %6 = arith.index_cast %5 : i32 to index
    %c0_3 = arith.constant 0 : index
    %7 = vector.load %arg2[%c0, %c0_2, %6, %c0_3] : memref<2x8x32x128xf32, #tpu.memory_space<vmem>>, vector<2x4x8x128xf32>
    %c0_4 = arith.constant 0 : index
    %c0_5 = arith.constant 0 : index
    %8 = arith.index_cast %5 : i32 to index
    %c0_6 = arith.constant 0 : index
    %9 = vector.load %arg3[%c0_4, %c0_5, %8, %c0_6] : memref<2x4x32x128xf32, #tpu.memory_space<vmem>>, vector<2x4x8x128xf32>
    %10 = vector.extract_strided_slice %7 {offsets = [0, 0, 0, 0], sizes = [2, 1, 8, 128], strides = [1, 1, 1, 1]} : vector<2x4x8x128xf32> to vector<2x1x8x128xf32>
    %11 = vector.shape_cast %10 : vector<2x1x8x128xf32> to vector<2x8x128xf32>
    %12 = vector.extract_strided_slice %7 {offsets = [0, 1, 0, 0], sizes = [2, 1, 8, 128], strides = [1, 1, 1, 1]} : vector<2x4x8x128xf32> to vector<2x1x8x128xf32>
    %13 = vector.shape_cast %12 : vector<2x1x8x128xf32> to vector<2x8x128xf32>
    %14 = vector.extract_strided_slice %7 {offsets = [0, 2, 0, 0], sizes = [2, 1, 8, 128], strides = [1, 1, 1, 1]} : vector<2x4x8x128xf32> to vector<2x1x8x128xf32>
    %15 = vector.shape_cast %14 : vector<2x1x8x128xf32> to vector<2x8x128xf32>
    %16 = vector.extract_strided_slice %7 {offsets = [0, 3, 0, 0], sizes = [2, 1, 8, 128], strides = [1, 1, 1, 1]} : vector<2x4x8x128xf32> to vector<2x1x8x128xf32>
    %17 = vector.shape_cast %16 : vector<2x1x8x128xf32> to vector<2x8x128xf32>
    %18 = vector.extract_strided_slice %9 {offsets = [0, 0, 0, 0], sizes = [2, 1, 8, 128], strides = [1, 1, 1, 1]} : vector<2x4x8x128xf32> to vector<2x1x8x128xf32>
    %19 = vector.shape_cast %18 : vector<2x1x8x128xf32> to vector<2x8x128xf32>
    %20 = vector.extract_strided_slice %9 {offsets = [0, 1, 0, 0], sizes = [2, 1, 8, 128], strides = [1, 1, 1, 1]} : vector<2x4x8x128xf32> to vector<2x1x8x128xf32>
    %21 = vector.shape_cast %20 : vector<2x1x8x128xf32> to vector<2x8x128xf32>
    %22 = vector.extract_strided_slice %9 {offsets = [0, 2, 0, 0], sizes = [2, 1, 8, 128], strides = [1, 1, 1, 1]} : vector<2x4x8x128xf32> to vector<2x1x8x128xf32>
    %23 = vector.shape_cast %22 : vector<2x1x8x128xf32> to vector<2x8x128xf32>
    %24 = vector.extract_strided_slice %9 {offsets = [0, 3, 0, 0], sizes = [2, 1, 8, 128], strides = [1, 1, 1, 1]} : vector<2x4x8x128xf32> to vector<2x1x8x128xf32>
    %25 = vector.shape_cast %24 : vector<2x1x8x128xf32> to vector<2x8x128xf32>
    %26 = arith.minimumf %15, %23 : vector<2x8x128xf32>
    %27 = arith.maximumf %11, %19 : vector<2x8x128xf32>
    %28 = arith.subf %26, %27 : vector<2x8x128xf32>
    %cst_7 = arith.constant 0.000000e+00 : f32
    %29 = vector.broadcast %cst_7 : f32 to vector<2x8x128xf32>
    %30 = arith.maximumf %28, %29 : vector<2x8x128xf32>
    %31 = arith.minimumf %17, %25 : vector<2x8x128xf32>
    %32 = arith.maximumf %13, %21 : vector<2x8x128xf32>
    %33 = arith.subf %31, %32 : vector<2x8x128xf32>
    %cst_8 = arith.constant 0.000000e+00 : f32
    %34 = vector.broadcast %cst_8 : f32 to vector<2x8x128xf32>
    %35 = arith.maximumf %33, %34 : vector<2x8x128xf32>
    %36 = arith.mulf %30, %35 : vector<2x8x128xf32>
    %37 = arith.subf %15, %11 : vector<2x8x128xf32>
    %38 = arith.subf %17, %13 : vector<2x8x128xf32>
    %39 = arith.mulf %37, %38 : vector<2x8x128xf32>
    %40 = arith.subf %23, %19 : vector<2x8x128xf32>
    %41 = arith.subf %25, %21 : vector<2x8x128xf32>
    %42 = arith.mulf %40, %41 : vector<2x8x128xf32>
    %43 = arith.addf %39, %42 : vector<2x8x128xf32>
    %44 = arith.subf %43, %36 : vector<2x8x128xf32>
    %cst_9 = arith.constant 1.000000e-07 : f32
    %45 = vector.broadcast %cst_9 : f32 to vector<2x8x128xf32>
    %46 = arith.addf %44, %45 : vector<2x8x128xf32>
    %47 = tpu.reciprocal %46 {approx = true} : vector<2x8x128xf32> -> vector<2x8x128xf32>
    %48 = arith.mulf %36, %47 : vector<2x8x128xf32>
    %49 = math.absf %7 : vector<2x4x8x128xf32>
    %cst_10 = arith.constant 0.000000e+00 : f32
    %50 = vector.broadcast %cst_10 : f32 to vector<2x4x8x128xf32>
    %51 = arith.subf %50, %49 : vector<2x4x8x128xf32>
    %52 = math.exp %51 : vector<2x4x8x128xf32>
    %53 = math.log1p %52 : vector<2x4x8x128xf32>
    %54 = vector.extract_strided_slice %7 {offsets = [0, 0, 0, 0], sizes = [2, 3, 8, 128], strides = [1, 1, 1, 1]} : vector<2x4x8x128xf32> to vector<2x3x8x128xf32>
    %55 = vector.extract_strided_slice %7 {offsets = [0, 1, 0, 0], sizes = [2, 3, 8, 128], strides = [1, 1, 1, 1]} : vector<2x4x8x128xf32> to vector<2x3x8x128xf32>
    %56 = vector.extract_strided_slice %9 {offsets = [0, 0, 0, 0], sizes = [2, 3, 8, 128], strides = [1, 1, 1, 1]} : vector<2x4x8x128xf32> to vector<2x3x8x128xf32>
    %57 = math.floor %56 : vector<2x3x8x128xf32>
    %58 = arith.subf %56, %57 : vector<2x3x8x128xf32>
    %cst_11 = arith.constant 0.000000e+00 : f32
    %59 = vector.broadcast %cst_11 : f32 to vector<2x3x8x128xf32>
    %60 = arith.maximumf %54, %59 : vector<2x3x8x128xf32>
    %61 = arith.mulf %54, %57 : vector<2x3x8x128xf32>
    %62 = arith.subf %60, %61 : vector<2x3x8x128xf32>
    %63 = vector.extract_strided_slice %53 {offsets = [0, 0, 0, 0], sizes = [2, 3, 8, 128], strides = [1, 1, 1, 1]} : vector<2x4x8x128xf32> to vector<2x3x8x128xf32>
    %64 = arith.addf %62, %63 : vector<2x3x8x128xf32>
    %cst_12 = arith.constant 0.000000e+00 : f32
    %65 = vector.broadcast %cst_12 : f32 to vector<2x3x8x128xf32>
    %66 = arith.maximumf %55, %65 : vector<2x3x8x128xf32>
    %67 = arith.mulf %55, %57 : vector<2x3x8x128xf32>
    %68 = arith.subf %66, %67 : vector<2x3x8x128xf32>
    %69 = arith.subf %68, %55 : vector<2x3x8x128xf32>
    %70 = vector.extract_strided_slice %53 {offsets = [0, 1, 0, 0], sizes = [2, 3, 8, 128], strides = [1, 1, 1, 1]} : vector<2x4x8x128xf32> to vector<2x3x8x128xf32>
    %71 = arith.addf %69, %70 : vector<2x3x8x128xf32>
    %72 = arith.subf %71, %64 : vector<2x3x8x128xf32>
    %73 = arith.mulf %72, %58 : vector<2x3x8x128xf32>
    %74 = arith.addf %64, %73 : vector<2x3x8x128xf32>
    %c0_13 = arith.constant 0 : index
    %c4 = arith.constant 4 : index
    %75 = arith.index_cast %5 : i32 to index
    %c0_14 = arith.constant 0 : index
    %76 = vector.load %arg2[%c0_13, %c4, %75, %c0_14] : memref<2x8x32x128xf32, #tpu.memory_space<vmem>>, vector<2x4x8x128xf32>
    %77 = math.absf %76 : vector<2x4x8x128xf32>
    %cst_15 = arith.constant 0.000000e+00 : f32
    %78 = vector.broadcast %cst_15 : f32 to vector<2x4x8x128xf32>
    %79 = arith.subf %78, %77 : vector<2x4x8x128xf32>
    %80 = math.exp %79 : vector<2x4x8x128xf32>
    %81 = math.log1p %80 : vector<2x4x8x128xf32>
    %cst_16 = arith.constant 0.000000e+00 : f32
    %82 = vector.broadcast %cst_16 : f32 to vector<2x4x8x128xf32>
    %83 = arith.maximumf %76, %82 : vector<2x4x8x128xf32>
    %84 = arith.mulf %76, %9 : vector<2x4x8x128xf32>
    %85 = arith.subf %83, %84 : vector<2x4x8x128xf32>
    %86 = arith.addf %85, %81 : vector<2x4x8x128xf32>
    %cst_17 = arith.constant dense<0.000000e+00> : vector<8x128xf32>
    %87 = vector.multi_reduction <add>, %48, %cst_17 [0] : vector<2x8x128xf32> to vector<8x128xf32>
    %88 = arith.addf %3, %87 : vector<8x128xf32>
    %cst_18 = arith.constant dense<0.000000e+00> : vector<8x128xf32>
    %89 = vector.multi_reduction <add>, %86, %cst_18 [0, 1] : vector<2x4x8x128xf32> to vector<8x128xf32>
    %90 = arith.addf %3, %89 : vector<8x128xf32>
    %cst_19 = arith.constant dense<0.000000e+00> : vector<8x128xf32>
    %91 = vector.multi_reduction <add>, %74, %cst_19 [0, 1] : vector<2x3x8x128xf32> to vector<8x128xf32>
    %92 = arith.addf %3, %91 : vector<8x128xf32>
    %c1_i32 = arith.constant 1 : i32
    %c8_i32_20 = arith.constant 8 : i32
    %93 = arith.muli %c1_i32, %c8_i32_20 : i32
    %94 = tpu.assume_multiple %93, 8 : i32
    %c0_21 = arith.constant 0 : index
    %c0_22 = arith.constant 0 : index
    %95 = arith.index_cast %94 : i32 to index
    %c0_23 = arith.constant 0 : index
    %96 = vector.load %arg2[%c0_21, %c0_22, %95, %c0_23] : memref<2x8x32x128xf32, #tpu.memory_space<vmem>>, vector<2x4x8x128xf32>
    %c0_24 = arith.constant 0 : index
    %c0_25 = arith.constant 0 : index
    %97 = arith.index_cast %94 : i32 to index
    %c0_26 = arith.constant 0 : index
    %98 = vector.load %arg3[%c0_24, %c0_25, %97, %c0_26] : memref<2x4x32x128xf32, #tpu.memory_space<vmem>>, vector<2x4x8x128xf32>
    %99 = vector.extract_strided_slice %96 {offsets = [0, 0, 0, 0], sizes = [2, 1, 8, 128], strides = [1, 1, 1, 1]} : vector<2x4x8x128xf32> to vector<2x1x8x128xf32>
    %100 = vector.shape_cast %99 : vector<2x1x8x128xf32> to vector<2x8x128xf32>
    %101 = vector.extract_strided_slice %96 {offsets = [0, 1, 0, 0], sizes = [2, 1, 8, 128], strides = [1, 1, 1, 1]} : vector<2x4x8x128xf32> to vector<2x1x8x128xf32>
    %102 = vector.shape_cast %101 : vector<2x1x8x128xf32> to vector<2x8x128xf32>
    %103 = vector.extract_strided_slice %96 {offsets = [0, 2, 0, 0], sizes = [2, 1, 8, 128], strides = [1, 1, 1, 1]} : vector<2x4x8x128xf32> to vector<2x1x8x128xf32>
    %104 = vector.shape_cast %103 : vector<2x1x8x128xf32> to vector<2x8x128xf32>
    %105 = vector.extract_strided_slice %96 {offsets = [0, 3, 0, 0], sizes = [2, 1, 8, 128], strides = [1, 1, 1, 1]} : vector<2x4x8x128xf32> to vector<2x1x8x128xf32>
    %106 = vector.shape_cast %105 : vector<2x1x8x128xf32> to vector<2x8x128xf32>
    %107 = vector.extract_strided_slice %98 {offsets = [0, 0, 0, 0], sizes = [2, 1, 8, 128], strides = [1, 1, 1, 1]} : vector<2x4x8x128xf32> to vector<2x1x8x128xf32>
    %108 = vector.shape_cast %107 : vector<2x1x8x128xf32> to vector<2x8x128xf32>
    %109 = vector.extract_strided_slice %98 {offsets = [0, 1, 0, 0], sizes = [2, 1, 8, 128], strides = [1, 1, 1, 1]} : vector<2x4x8x128xf32> to vector<2x1x8x128xf32>
    %110 = vector.shape_cast %109 : vector<2x1x8x128xf32> to vector<2x8x128xf32>
    %111 = vector.extract_strided_slice %98 {offsets = [0, 2, 0, 0], sizes = [2, 1, 8, 128], strides = [1, 1, 1, 1]} : vector<2x4x8x128xf32> to vector<2x1x8x128xf32>
    %112 = vector.shape_cast %111 : vector<2x1x8x128xf32> to vector<2x8x128xf32>
    %113 = vector.extract_strided_slice %98 {offsets = [0, 3, 0, 0], sizes = [2, 1, 8, 128], strides = [1, 1, 1, 1]} : vector<2x4x8x128xf32> to vector<2x1x8x128xf32>
    %114 = vector.shape_cast %113 : vector<2x1x8x128xf32> to vector<2x8x128xf32>
    %115 = arith.minimumf %104, %112 : vector<2x8x128xf32>
    %116 = arith.maximumf %100, %108 : vector<2x8x128xf32>
    %117 = arith.subf %115, %116 : vector<2x8x128xf32>
    %cst_27 = arith.constant 0.000000e+00 : f32
    %118 = vector.broadcast %cst_27 : f32 to vector<2x8x128xf32>
    %119 = arith.maximumf %117, %118 : vector<2x8x128xf32>
    %120 = arith.minimumf %106, %114 : vector<2x8x128xf32>
    %121 = arith.maximumf %102, %110 : vector<2x8x128xf32>
    %122 = arith.subf %120, %121 : vector<2x8x128xf32>
    %cst_28 = arith.constant 0.000000e+00 : f32
    %123 = vector.broadcast %cst_28 : f32 to vector<2x8x128xf32>
    %124 = arith.maximumf %122, %123 : vector<2x8x128xf32>
    %125 = arith.mulf %119, %124 : vector<2x8x128xf32>
    %126 = arith.subf %104, %100 : vector<2x8x128xf32>
    %127 = arith.subf %106, %102 : vector<2x8x128xf32>
    %128 = arith.mulf %126, %127 : vector<2x8x128xf32>
    %129 = arith.subf %112, %108 : vector<2x8x128xf32>
    %130 = arith.subf %114, %110 : vector<2x8x128xf32>
    %131 = arith.mulf %129, %130 : vector<2x8x128xf32>
    %132 = arith.addf %128, %131 : vector<2x8x128xf32>
    %133 = arith.subf %132, %125 : vector<2x8x128xf32>
    %cst_29 = arith.constant 1.000000e-07 : f32
    %134 = vector.broadcast %cst_29 : f32 to vector<2x8x128xf32>
    %135 = arith.addf %133, %134 : vector<2x8x128xf32>
    %136 = tpu.reciprocal %135 {approx = true} : vector<2x8x128xf32> -> vector<2x8x128xf32>
    %137 = arith.mulf %125, %136 : vector<2x8x128xf32>
    %138 = math.absf %96 : vector<2x4x8x128xf32>
    %cst_30 = arith.constant 0.000000e+00 : f32
    %139 = vector.broadcast %cst_30 : f32 to vector<2x4x8x128xf32>
    %140 = arith.subf %139, %138 : vector<2x4x8x128xf32>
    %141 = math.exp %140 : vector<2x4x8x128xf32>
    %142 = math.log1p %141 : vector<2x4x8x128xf32>
    %143 = vector.extract_strided_slice %96 {offsets = [0, 0, 0, 0], sizes = [2, 3, 8, 128], strides = [1, 1, 1, 1]} : vector<2x4x8x128xf32> to vector<2x3x8x128xf32>
    %144 = vector.extract_strided_slice %96 {offsets = [0, 1, 0, 0], sizes = [2, 3, 8, 128], strides = [1, 1, 1, 1]} : vector<2x4x8x128xf32> to vector<2x3x8x128xf32>
    %145 = vector.extract_strided_slice %98 {offsets = [0, 0, 0, 0], sizes = [2, 3, 8, 128], strides = [1, 1, 1, 1]} : vector<2x4x8x128xf32> to vector<2x3x8x128xf32>
    %146 = math.floor %145 : vector<2x3x8x128xf32>
    %147 = arith.subf %145, %146 : vector<2x3x8x128xf32>
    %cst_31 = arith.constant 0.000000e+00 : f32
    %148 = vector.broadcast %cst_31 : f32 to vector<2x3x8x128xf32>
    %149 = arith.maximumf %143, %148 : vector<2x3x8x128xf32>
    %150 = arith.mulf %143, %146 : vector<2x3x8x128xf32>
    %151 = arith.subf %149, %150 : vector<2x3x8x128xf32>
    %152 = vector.extract_strided_slice %142 {offsets = [0, 0, 0, 0], sizes = [2, 3, 8, 128], strides = [1, 1, 1, 1]} : vector<2x4x8x128xf32> to vector<2x3x8x128xf32>
    %153 = arith.addf %151, %152 : vector<2x3x8x128xf32>
    %cst_32 = arith.constant 0.000000e+00 : f32
    %154 = vector.broadcast %cst_32 : f32 to vector<2x3x8x128xf32>
    %155 = arith.maximumf %144, %154 : vector<2x3x8x128xf32>
    %156 = arith.mulf %144, %146 : vector<2x3x8x128xf32>
    %157 = arith.subf %155, %156 : vector<2x3x8x128xf32>
    %158 = arith.subf %157, %144 : vector<2x3x8x128xf32>
    %159 = vector.extract_strided_slice %142 {offsets = [0, 1, 0, 0], sizes = [2, 3, 8, 128], strides = [1, 1, 1, 1]} : vector<2x4x8x128xf32> to vector<2x3x8x128xf32>
    %160 = arith.addf %158, %159 : vector<2x3x8x128xf32>
    %161 = arith.subf %160, %153 : vector<2x3x8x128xf32>
    %162 = arith.mulf %161, %147 : vector<2x3x8x128xf32>
    %163 = arith.addf %153, %162 : vector<2x3x8x128xf32>
    %c0_33 = arith.constant 0 : index
    %c4_34 = arith.constant 4 : index
    %164 = arith.index_cast %94 : i32 to index
    %c0_35 = arith.constant 0 : index
    %165 = vector.load %arg2[%c0_33, %c4_34, %164, %c0_35] : memref<2x8x32x128xf32, #tpu.memory_space<vmem>>, vector<2x4x8x128xf32>
    %166 = math.absf %165 : vector<2x4x8x128xf32>
    %cst_36 = arith.constant 0.000000e+00 : f32
    %167 = vector.broadcast %cst_36 : f32 to vector<2x4x8x128xf32>
    %168 = arith.subf %167, %166 : vector<2x4x8x128xf32>
    %169 = math.exp %168 : vector<2x4x8x128xf32>
    %170 = math.log1p %169 : vector<2x4x8x128xf32>
    %cst_37 = arith.constant 0.000000e+00 : f32
    %171 = vector.broadcast %cst_37 : f32 to vector<2x4x8x128xf32>
    %172 = arith.maximumf %165, %171 : vector<2x4x8x128xf32>
    %173 = arith.mulf %165, %98 : vector<2x4x8x128xf32>
    %174 = arith.subf %172, %173 : vector<2x4x8x128xf32>
    %175 = arith.addf %174, %170 : vector<2x4x8x128xf32>
    %cst_38 = arith.constant dense<0.000000e+00> : vector<8x128xf32>
    %176 = vector.multi_reduction <add>, %137, %cst_38 [0] : vector<2x8x128xf32> to vector<8x128xf32>
    %177 = arith.addf %88, %176 : vector<8x128xf32>
    %cst_39 = arith.constant dense<0.000000e+00> : vector<8x128xf32>
    %178 = vector.multi_reduction <add>, %175, %cst_39 [0, 1] : vector<2x4x8x128xf32> to vector<8x128xf32>
    %179 = arith.addf %90, %178 : vector<8x128xf32>
    %cst_40 = arith.constant dense<0.000000e+00> : vector<8x128xf32>
    %180 = vector.multi_reduction <add>, %163, %cst_40 [0, 1] : vector<2x3x8x128xf32> to vector<8x128xf32>
    %181 = arith.addf %92, %180 : vector<8x128xf32>
    %c2_i32 = arith.constant 2 : i32
    %c8_i32_41 = arith.constant 8 : i32
    %182 = arith.muli %c2_i32, %c8_i32_41 : i32
    %183 = tpu.assume_multiple %182, 8 : i32
    %c0_42 = arith.constant 0 : index
    %c0_43 = arith.constant 0 : index
    %184 = arith.index_cast %183 : i32 to index
    %c0_44 = arith.constant 0 : index
    %185 = vector.load %arg2[%c0_42, %c0_43, %184, %c0_44] : memref<2x8x32x128xf32, #tpu.memory_space<vmem>>, vector<2x4x8x128xf32>
    %c0_45 = arith.constant 0 : index
    %c0_46 = arith.constant 0 : index
    %186 = arith.index_cast %183 : i32 to index
    %c0_47 = arith.constant 0 : index
    %187 = vector.load %arg3[%c0_45, %c0_46, %186, %c0_47] : memref<2x4x32x128xf32, #tpu.memory_space<vmem>>, vector<2x4x8x128xf32>
    %188 = vector.extract_strided_slice %185 {offsets = [0, 0, 0, 0], sizes = [2, 1, 8, 128], strides = [1, 1, 1, 1]} : vector<2x4x8x128xf32> to vector<2x1x8x128xf32>
    %189 = vector.shape_cast %188 : vector<2x1x8x128xf32> to vector<2x8x128xf32>
    %190 = vector.extract_strided_slice %185 {offsets = [0, 1, 0, 0], sizes = [2, 1, 8, 128], strides = [1, 1, 1, 1]} : vector<2x4x8x128xf32> to vector<2x1x8x128xf32>
    %191 = vector.shape_cast %190 : vector<2x1x8x128xf32> to vector<2x8x128xf32>
    %192 = vector.extract_strided_slice %185 {offsets = [0, 2, 0, 0], sizes = [2, 1, 8, 128], strides = [1, 1, 1, 1]} : vector<2x4x8x128xf32> to vector<2x1x8x128xf32>
    %193 = vector.shape_cast %192 : vector<2x1x8x128xf32> to vector<2x8x128xf32>
    %194 = vector.extract_strided_slice %185 {offsets = [0, 3, 0, 0], sizes = [2, 1, 8, 128], strides = [1, 1, 1, 1]} : vector<2x4x8x128xf32> to vector<2x1x8x128xf32>
    %195 = vector.shape_cast %194 : vector<2x1x8x128xf32> to vector<2x8x128xf32>
    %196 = vector.extract_strided_slice %187 {offsets = [0, 0, 0, 0], sizes = [2, 1, 8, 128], strides = [1, 1, 1, 1]} : vector<2x4x8x128xf32> to vector<2x1x8x128xf32>
    %197 = vector.shape_cast %196 : vector<2x1x8x128xf32> to vector<2x8x128xf32>
    %198 = vector.extract_strided_slice %187 {offsets = [0, 1, 0, 0], sizes = [2, 1, 8, 128], strides = [1, 1, 1, 1]} : vector<2x4x8x128xf32> to vector<2x1x8x128xf32>
    %199 = vector.shape_cast %198 : vector<2x1x8x128xf32> to vector<2x8x128xf32>
    %200 = vector.extract_strided_slice %187 {offsets = [0, 2, 0, 0], sizes = [2, 1, 8, 128], strides = [1, 1, 1, 1]} : vector<2x4x8x128xf32> to vector<2x1x8x128xf32>
    %201 = vector.shape_cast %200 : vector<2x1x8x128xf32> to vector<2x8x128xf32>
    %202 = vector.extract_strided_slice %187 {offsets = [0, 3, 0, 0], sizes = [2, 1, 8, 128], strides = [1, 1, 1, 1]} : vector<2x4x8x128xf32> to vector<2x1x8x128xf32>
    %203 = vector.shape_cast %202 : vector<2x1x8x128xf32> to vector<2x8x128xf32>
    %204 = arith.minimumf %193, %201 : vector<2x8x128xf32>
    %205 = arith.maximumf %189, %197 : vector<2x8x128xf32>
    %206 = arith.subf %204, %205 : vector<2x8x128xf32>
    %cst_48 = arith.constant 0.000000e+00 : f32
    %207 = vector.broadcast %cst_48 : f32 to vector<2x8x128xf32>
    %208 = arith.maximumf %206, %207 : vector<2x8x128xf32>
    %209 = arith.minimumf %195, %203 : vector<2x8x128xf32>
    %210 = arith.maximumf %191, %199 : vector<2x8x128xf32>
    %211 = arith.subf %209, %210 : vector<2x8x128xf32>
    %cst_49 = arith.constant 0.000000e+00 : f32
    %212 = vector.broadcast %cst_49 : f32 to vector<2x8x128xf32>
    %213 = arith.maximumf %211, %212 : vector<2x8x128xf32>
    %214 = arith.mulf %208, %213 : vector<2x8x128xf32>
    %215 = arith.subf %193, %189 : vector<2x8x128xf32>
    %216 = arith.subf %195, %191 : vector<2x8x128xf32>
    %217 = arith.mulf %215, %216 : vector<2x8x128xf32>
    %218 = arith.subf %201, %197 : vector<2x8x128xf32>
    %219 = arith.subf %203, %199 : vector<2x8x128xf32>
    %220 = arith.mulf %218, %219 : vector<2x8x128xf32>
    %221 = arith.addf %217, %220 : vector<2x8x128xf32>
    %222 = arith.subf %221, %214 : vector<2x8x128xf32>
    %cst_50 = arith.constant 1.000000e-07 : f32
    %223 = vector.broadcast %cst_50 : f32 to vector<2x8x128xf32>
    %224 = arith.addf %222, %223 : vector<2x8x128xf32>
    %225 = tpu.reciprocal %224 {approx = true} : vector<2x8x128xf32> -> vector<2x8x128xf32>
    %226 = arith.mulf %214, %225 : vector<2x8x128xf32>
    %227 = math.absf %185 : vector<2x4x8x128xf32>
    %cst_51 = arith.constant 0.000000e+00 : f32
    %228 = vector.broadcast %cst_51 : f32 to vector<2x4x8x128xf32>
    %229 = arith.subf %228, %227 : vector<2x4x8x128xf32>
    %230 = math.exp %229 : vector<2x4x8x128xf32>
    %231 = math.log1p %230 : vector<2x4x8x128xf32>
    %232 = vector.extract_strided_slice %185 {offsets = [0, 0, 0, 0], sizes = [2, 3, 8, 128], strides = [1, 1, 1, 1]} : vector<2x4x8x128xf32> to vector<2x3x8x128xf32>
    %233 = vector.extract_strided_slice %185 {offsets = [0, 1, 0, 0], sizes = [2, 3, 8, 128], strides = [1, 1, 1, 1]} : vector<2x4x8x128xf32> to vector<2x3x8x128xf32>
    %234 = vector.extract_strided_slice %187 {offsets = [0, 0, 0, 0], sizes = [2, 3, 8, 128], strides = [1, 1, 1, 1]} : vector<2x4x8x128xf32> to vector<2x3x8x128xf32>
    %235 = math.floor %234 : vector<2x3x8x128xf32>
    %236 = arith.subf %234, %235 : vector<2x3x8x128xf32>
    %cst_52 = arith.constant 0.000000e+00 : f32
    %237 = vector.broadcast %cst_52 : f32 to vector<2x3x8x128xf32>
    %238 = arith.maximumf %232, %237 : vector<2x3x8x128xf32>
    %239 = arith.mulf %232, %235 : vector<2x3x8x128xf32>
    %240 = arith.subf %238, %239 : vector<2x3x8x128xf32>
    %241 = vector.extract_strided_slice %231 {offsets = [0, 0, 0, 0], sizes = [2, 3, 8, 128], strides = [1, 1, 1, 1]} : vector<2x4x8x128xf32> to vector<2x3x8x128xf32>
    %242 = arith.addf %240, %241 : vector<2x3x8x128xf32>
    %cst_53 = arith.constant 0.000000e+00 : f32
    %243 = vector.broadcast %cst_53 : f32 to vector<2x3x8x128xf32>
    %244 = arith.maximumf %233, %243 : vector<2x3x8x128xf32>
    %245 = arith.mulf %233, %235 : vector<2x3x8x128xf32>
    %246 = arith.subf %244, %245 : vector<2x3x8x128xf32>
    %247 = arith.subf %246, %233 : vector<2x3x8x128xf32>
    %248 = vector.extract_strided_slice %231 {offsets = [0, 1, 0, 0], sizes = [2, 3, 8, 128], strides = [1, 1, 1, 1]} : vector<2x4x8x128xf32> to vector<2x3x8x128xf32>
    %249 = arith.addf %247, %248 : vector<2x3x8x128xf32>
    %250 = arith.subf %249, %242 : vector<2x3x8x128xf32>
    %251 = arith.mulf %250, %236 : vector<2x3x8x128xf32>
    %252 = arith.addf %242, %251 : vector<2x3x8x128xf32>
    %c0_54 = arith.constant 0 : index
    %c4_55 = arith.constant 4 : index
    %253 = arith.index_cast %183 : i32 to index
    %c0_56 = arith.constant 0 : index
    %254 = vector.load %arg2[%c0_54, %c4_55, %253, %c0_56] : memref<2x8x32x128xf32, #tpu.memory_space<vmem>>, vector<2x4x8x128xf32>
    %255 = math.absf %254 : vector<2x4x8x128xf32>
    %cst_57 = arith.constant 0.000000e+00 : f32
    %256 = vector.broadcast %cst_57 : f32 to vector<2x4x8x128xf32>
    %257 = arith.subf %256, %255 : vector<2x4x8x128xf32>
    %258 = math.exp %257 : vector<2x4x8x128xf32>
    %259 = math.log1p %258 : vector<2x4x8x128xf32>
    %cst_58 = arith.constant 0.000000e+00 : f32
    %260 = vector.broadcast %cst_58 : f32 to vector<2x4x8x128xf32>
    %261 = arith.maximumf %254, %260 : vector<2x4x8x128xf32>
    %262 = arith.mulf %254, %187 : vector<2x4x8x128xf32>
    %263 = arith.subf %261, %262 : vector<2x4x8x128xf32>
    %264 = arith.addf %263, %259 : vector<2x4x8x128xf32>
    %cst_59 = arith.constant dense<0.000000e+00> : vector<8x128xf32>
    %265 = vector.multi_reduction <add>, %226, %cst_59 [0] : vector<2x8x128xf32> to vector<8x128xf32>
    %266 = arith.addf %177, %265 : vector<8x128xf32>
    %cst_60 = arith.constant dense<0.000000e+00> : vector<8x128xf32>
    %267 = vector.multi_reduction <add>, %264, %cst_60 [0, 1] : vector<2x4x8x128xf32> to vector<8x128xf32>
    %268 = arith.addf %179, %267 : vector<8x128xf32>
    %cst_61 = arith.constant dense<0.000000e+00> : vector<8x128xf32>
    %269 = vector.multi_reduction <add>, %252, %cst_61 [0, 1] : vector<2x3x8x128xf32> to vector<8x128xf32>
    %270 = arith.addf %181, %269 : vector<8x128xf32>
    %c3_i32 = arith.constant 3 : i32
    %c8_i32_62 = arith.constant 8 : i32
    %271 = arith.muli %c3_i32, %c8_i32_62 : i32
    %272 = tpu.assume_multiple %271, 8 : i32
    %c0_63 = arith.constant 0 : index
    %c0_64 = arith.constant 0 : index
    %273 = arith.index_cast %272 : i32 to index
    %c0_65 = arith.constant 0 : index
    %274 = vector.load %arg2[%c0_63, %c0_64, %273, %c0_65] : memref<2x8x32x128xf32, #tpu.memory_space<vmem>>, vector<2x4x8x128xf32>
    %c0_66 = arith.constant 0 : index
    %c0_67 = arith.constant 0 : index
    %275 = arith.index_cast %272 : i32 to index
    %c0_68 = arith.constant 0 : index
    %276 = vector.load %arg3[%c0_66, %c0_67, %275, %c0_68] : memref<2x4x32x128xf32, #tpu.memory_space<vmem>>, vector<2x4x8x128xf32>
    %277 = vector.extract_strided_slice %274 {offsets = [0, 0, 0, 0], sizes = [2, 1, 8, 128], strides = [1, 1, 1, 1]} : vector<2x4x8x128xf32> to vector<2x1x8x128xf32>
    %278 = vector.shape_cast %277 : vector<2x1x8x128xf32> to vector<2x8x128xf32>
    %279 = vector.extract_strided_slice %274 {offsets = [0, 1, 0, 0], sizes = [2, 1, 8, 128], strides = [1, 1, 1, 1]} : vector<2x4x8x128xf32> to vector<2x1x8x128xf32>
    %280 = vector.shape_cast %279 : vector<2x1x8x128xf32> to vector<2x8x128xf32>
    %281 = vector.extract_strided_slice %274 {offsets = [0, 2, 0, 0], sizes = [2, 1, 8, 128], strides = [1, 1, 1, 1]} : vector<2x4x8x128xf32> to vector<2x1x8x128xf32>
    %282 = vector.shape_cast %281 : vector<2x1x8x128xf32> to vector<2x8x128xf32>
    %283 = vector.extract_strided_slice %274 {offsets = [0, 3, 0, 0], sizes = [2, 1, 8, 128], strides = [1, 1, 1, 1]} : vector<2x4x8x128xf32> to vector<2x1x8x128xf32>
    %284 = vector.shape_cast %283 : vector<2x1x8x128xf32> to vector<2x8x128xf32>
    %285 = vector.extract_strided_slice %276 {offsets = [0, 0, 0, 0], sizes = [2, 1, 8, 128], strides = [1, 1, 1, 1]} : vector<2x4x8x128xf32> to vector<2x1x8x128xf32>
    %286 = vector.shape_cast %285 : vector<2x1x8x128xf32> to vector<2x8x128xf32>
    %287 = vector.extract_strided_slice %276 {offsets = [0, 1, 0, 0], sizes = [2, 1, 8, 128], strides = [1, 1, 1, 1]} : vector<2x4x8x128xf32> to vector<2x1x8x128xf32>
    %288 = vector.shape_cast %287 : vector<2x1x8x128xf32> to vector<2x8x128xf32>
    %289 = vector.extract_strided_slice %276 {offsets = [0, 2, 0, 0], sizes = [2, 1, 8, 128], strides = [1, 1, 1, 1]} : vector<2x4x8x128xf32> to vector<2x1x8x128xf32>
    %290 = vector.shape_cast %289 : vector<2x1x8x128xf32> to vector<2x8x128xf32>
    %291 = vector.extract_strided_slice %276 {offsets = [0, 3, 0, 0], sizes = [2, 1, 8, 128], strides = [1, 1, 1, 1]} : vector<2x4x8x128xf32> to vector<2x1x8x128xf32>
    %292 = vector.shape_cast %291 : vector<2x1x8x128xf32> to vector<2x8x128xf32>
    %293 = arith.minimumf %282, %290 : vector<2x8x128xf32>
    %294 = arith.maximumf %278, %286 : vector<2x8x128xf32>
    %295 = arith.subf %293, %294 : vector<2x8x128xf32>
    %cst_69 = arith.constant 0.000000e+00 : f32
    %296 = vector.broadcast %cst_69 : f32 to vector<2x8x128xf32>
    %297 = arith.maximumf %295, %296 : vector<2x8x128xf32>
    %298 = arith.minimumf %284, %292 : vector<2x8x128xf32>
    %299 = arith.maximumf %280, %288 : vector<2x8x128xf32>
    %300 = arith.subf %298, %299 : vector<2x8x128xf32>
    %cst_70 = arith.constant 0.000000e+00 : f32
    %301 = vector.broadcast %cst_70 : f32 to vector<2x8x128xf32>
    %302 = arith.maximumf %300, %301 : vector<2x8x128xf32>
    %303 = arith.mulf %297, %302 : vector<2x8x128xf32>
    %304 = arith.subf %282, %278 : vector<2x8x128xf32>
    %305 = arith.subf %284, %280 : vector<2x8x128xf32>
    %306 = arith.mulf %304, %305 : vector<2x8x128xf32>
    %307 = arith.subf %290, %286 : vector<2x8x128xf32>
    %308 = arith.subf %292, %288 : vector<2x8x128xf32>
    %309 = arith.mulf %307, %308 : vector<2x8x128xf32>
    %310 = arith.addf %306, %309 : vector<2x8x128xf32>
    %311 = arith.subf %310, %303 : vector<2x8x128xf32>
    %cst_71 = arith.constant 1.000000e-07 : f32
    %312 = vector.broadcast %cst_71 : f32 to vector<2x8x128xf32>
    %313 = arith.addf %311, %312 : vector<2x8x128xf32>
    %314 = tpu.reciprocal %313 {approx = true} : vector<2x8x128xf32> -> vector<2x8x128xf32>
    %315 = arith.mulf %303, %314 : vector<2x8x128xf32>
    %316 = math.absf %274 : vector<2x4x8x128xf32>
    %cst_72 = arith.constant 0.000000e+00 : f32
    %317 = vector.broadcast %cst_72 : f32 to vector<2x4x8x128xf32>
    %318 = arith.subf %317, %316 : vector<2x4x8x128xf32>
    %319 = math.exp %318 : vector<2x4x8x128xf32>
    %320 = math.log1p %319 : vector<2x4x8x128xf32>
    %321 = vector.extract_strided_slice %274 {offsets = [0, 0, 0, 0], sizes = [2, 3, 8, 128], strides = [1, 1, 1, 1]} : vector<2x4x8x128xf32> to vector<2x3x8x128xf32>
    %322 = vector.extract_strided_slice %274 {offsets = [0, 1, 0, 0], sizes = [2, 3, 8, 128], strides = [1, 1, 1, 1]} : vector<2x4x8x128xf32> to vector<2x3x8x128xf32>
    %323 = vector.extract_strided_slice %276 {offsets = [0, 0, 0, 0], sizes = [2, 3, 8, 128], strides = [1, 1, 1, 1]} : vector<2x4x8x128xf32> to vector<2x3x8x128xf32>
    %324 = math.floor %323 : vector<2x3x8x128xf32>
    %325 = arith.subf %323, %324 : vector<2x3x8x128xf32>
    %cst_73 = arith.constant 0.000000e+00 : f32
    %326 = vector.broadcast %cst_73 : f32 to vector<2x3x8x128xf32>
    %327 = arith.maximumf %321, %326 : vector<2x3x8x128xf32>
    %328 = arith.mulf %321, %324 : vector<2x3x8x128xf32>
    %329 = arith.subf %327, %328 : vector<2x3x8x128xf32>
    %330 = vector.extract_strided_slice %320 {offsets = [0, 0, 0, 0], sizes = [2, 3, 8, 128], strides = [1, 1, 1, 1]} : vector<2x4x8x128xf32> to vector<2x3x8x128xf32>
    %331 = arith.addf %329, %330 : vector<2x3x8x128xf32>
    %cst_74 = arith.constant 0.000000e+00 : f32
    %332 = vector.broadcast %cst_74 : f32 to vector<2x3x8x128xf32>
    %333 = arith.maximumf %322, %332 : vector<2x3x8x128xf32>
    %334 = arith.mulf %322, %324 : vector<2x3x8x128xf32>
    %335 = arith.subf %333, %334 : vector<2x3x8x128xf32>
    %336 = arith.subf %335, %322 : vector<2x3x8x128xf32>
    %337 = vector.extract_strided_slice %320 {offsets = [0, 1, 0, 0], sizes = [2, 3, 8, 128], strides = [1, 1, 1, 1]} : vector<2x4x8x128xf32> to vector<2x3x8x128xf32>
    %338 = arith.addf %336, %337 : vector<2x3x8x128xf32>
    %339 = arith.subf %338, %331 : vector<2x3x8x128xf32>
    %340 = arith.mulf %339, %325 : vector<2x3x8x128xf32>
    %341 = arith.addf %331, %340 : vector<2x3x8x128xf32>
    %c0_75 = arith.constant 0 : index
    %c4_76 = arith.constant 4 : index
    %342 = arith.index_cast %272 : i32 to index
    %c0_77 = arith.constant 0 : index
    %343 = vector.load %arg2[%c0_75, %c4_76, %342, %c0_77] : memref<2x8x32x128xf32, #tpu.memory_space<vmem>>, vector<2x4x8x128xf32>
    %344 = math.absf %343 : vector<2x4x8x128xf32>
    %cst_78 = arith.constant 0.000000e+00 : f32
    %345 = vector.broadcast %cst_78 : f32 to vector<2x4x8x128xf32>
    %346 = arith.subf %345, %344 : vector<2x4x8x128xf32>
    %347 = math.exp %346 : vector<2x4x8x128xf32>
    %348 = math.log1p %347 : vector<2x4x8x128xf32>
    %cst_79 = arith.constant 0.000000e+00 : f32
    %349 = vector.broadcast %cst_79 : f32 to vector<2x4x8x128xf32>
    %350 = arith.maximumf %343, %349 : vector<2x4x8x128xf32>
    %351 = arith.mulf %343, %276 : vector<2x4x8x128xf32>
    %352 = arith.subf %350, %351 : vector<2x4x8x128xf32>
    %353 = arith.addf %352, %348 : vector<2x4x8x128xf32>
    %cst_80 = arith.constant dense<0.000000e+00> : vector<8x128xf32>
    %354 = vector.multi_reduction <add>, %315, %cst_80 [0] : vector<2x8x128xf32> to vector<8x128xf32>
    %355 = arith.addf %266, %354 : vector<8x128xf32>
    %cst_81 = arith.constant dense<0.000000e+00> : vector<8x128xf32>
    %356 = vector.multi_reduction <add>, %353, %cst_81 [0, 1] : vector<2x4x8x128xf32> to vector<8x128xf32>
    %357 = arith.addf %268, %356 : vector<8x128xf32>
    %cst_82 = arith.constant dense<0.000000e+00> : vector<8x128xf32>
    %358 = vector.multi_reduction <add>, %341, %cst_82 [0, 1] : vector<2x3x8x128xf32> to vector<8x128xf32>
    %359 = arith.addf %270, %358 : vector<8x128xf32>
    %c4_i32 = arith.constant 4 : i32
    %c0_83 = arith.constant 0 : index
    %c0_84 = arith.constant 0 : index
    %c0_85 = arith.constant 0 : index
    %c0_86 = arith.constant 0 : index
    %360 = vector.load %arg4[%c0_83, %c0_84, %c0_85, %c0_86] : memref<1x3x8x128xf32, #tpu.memory_space<vmem>>, vector<1x1x8x128xf32>
    %361 = vector.shape_cast %360 : vector<1x1x8x128xf32> to vector<8x128xf32>
    %362 = arith.addf %361, %355 : vector<8x128xf32>
    %c0_87 = arith.constant 0 : index
    %c0_88 = arith.constant 0 : index
    %c0_89 = arith.constant 0 : index
    %c0_90 = arith.constant 0 : index
    %363 = vector.load %arg4[%c0_87, %c0_88, %c0_89, %c0_90] : memref<1x3x8x128xf32, #tpu.memory_space<vmem>>, vector<1x1x8x128xf32>
    %364 = vector.shape_cast %363 : vector<1x1x8x128xf32> to vector<8x128xf32>
    %365 = vector.shape_cast %362 : vector<8x128xf32> to vector<1x1x8x128xf32>
    tpu.vector_store %arg4[%c0_87, %c0_88, %c0_89, %c0_90], %365 {strides = array<i32>} : memref<1x3x8x128xf32, #tpu.memory_space<vmem>>, vector<1x1x8x128xf32>,
    %c0_91 = arith.constant 0 : index
    %c1 = arith.constant 1 : index
    %c0_92 = arith.constant 0 : index
    %c0_93 = arith.constant 0 : index
    %366 = vector.load %arg4[%c0_91, %c1, %c0_92, %c0_93] : memref<1x3x8x128xf32, #tpu.memory_space<vmem>>, vector<1x1x8x128xf32>
    %367 = vector.shape_cast %366 : vector<1x1x8x128xf32> to vector<8x128xf32>
    %368 = arith.addf %367, %357 : vector<8x128xf32>
    %c0_94 = arith.constant 0 : index
    %c1_95 = arith.constant 1 : index
    %c0_96 = arith.constant 0 : index
    %c0_97 = arith.constant 0 : index
    %369 = vector.load %arg4[%c0_94, %c1_95, %c0_96, %c0_97] : memref<1x3x8x128xf32, #tpu.memory_space<vmem>>, vector<1x1x8x128xf32>
    %370 = vector.shape_cast %369 : vector<1x1x8x128xf32> to vector<8x128xf32>
    %371 = vector.shape_cast %368 : vector<8x128xf32> to vector<1x1x8x128xf32>
    tpu.vector_store %arg4[%c0_94, %c1_95, %c0_96, %c0_97], %371 {strides = array<i32>} : memref<1x3x8x128xf32, #tpu.memory_space<vmem>>, vector<1x1x8x128xf32>,
    %c0_98 = arith.constant 0 : index
    %c2 = arith.constant 2 : index
    %c0_99 = arith.constant 0 : index
    %c0_100 = arith.constant 0 : index
    %372 = vector.load %arg4[%c0_98, %c2, %c0_99, %c0_100] : memref<1x3x8x128xf32, #tpu.memory_space<vmem>>, vector<1x1x8x128xf32>
    %373 = vector.shape_cast %372 : vector<1x1x8x128xf32> to vector<8x128xf32>
    %374 = arith.addf %373, %359 : vector<8x128xf32>
    %c0_101 = arith.constant 0 : index
    %c2_102 = arith.constant 2 : index
    %c0_103 = arith.constant 0 : index
    %c0_104 = arith.constant 0 : index
    %375 = vector.load %arg4[%c0_101, %c2_102, %c0_103, %c0_104] : memref<1x3x8x128xf32, #tpu.memory_space<vmem>>, vector<1x1x8x128xf32>
    %376 = vector.shape_cast %375 : vector<1x1x8x128xf32> to vector<8x128xf32>
    %377 = vector.shape_cast %374 : vector<8x128xf32> to vector<1x1x8x128xf32>
    tpu.vector_store %arg4[%c0_101, %c2_102, %c0_103, %c0_104], %377 {strides = array<i32>} : memref<1x3x8x128xf32, #tpu.memory_space<vmem>>, vector<1x1x8x128xf32>,
    return
  }
  func.func @transform_0(%arg0: i32, %arg1: i32) -> (i32, i32, i32, i32) {
    %c1_i32 = arith.constant 1 : i32
    %0 = arith.muli %arg0, %c1_i32 : i32
    %1 = arith.addi %0, %arg1 : i32
    %c0_i32 = arith.constant 0 : i32
    %c0_i32_0 = arith.constant 0 : i32
    %c0_i32_1 = arith.constant 0 : i32
    %c0_i32_2 = arith.constant 0 : i32
    return %c0_i32, %c0_i32_0, %1, %c0_i32_1 : i32, i32, i32, i32
  }
  func.func @transform_1(%arg0: i32, %arg1: i32) -> (i32, i32, i32, i32) {
    %c1_i32 = arith.constant 1 : i32
    %0 = arith.muli %arg0, %c1_i32 : i32
    %1 = arith.addi %0, %arg1 : i32
    %c0_i32 = arith.constant 0 : i32
    %c0_i32_0 = arith.constant 0 : i32
    %c0_i32_1 = arith.constant 0 : i32
    %c0_i32_2 = arith.constant 0 : i32
    return %c0_i32, %c0_i32_0, %1, %c0_i32_1 : i32, i32, i32, i32
  }
  func.func @transform_2(%arg0: i32, %arg1: i32) -> (i32, i32, i32, i32) {
    %c0_i32 = arith.constant 0 : i32
    %c0_i32_0 = arith.constant 0 : i32
    %c0_i32_1 = arith.constant 0 : i32
    %c0_i32_2 = arith.constant 0 : i32
    return %arg0, %c0_i32, %c0_i32_0, %c0_i32_1 : i32, i32, i32, i32
  }
}

</mosaic_0001>

<llo_original>
// kernel: tpu_custom_call.1
$region0: #{tpu_custom_call.1}
  #allocation0 [shape = 'u32[]', space=smem, size = 0x4, offset = 0x4, fixed_abs, tag = 'smem constant byte address 0x4 - core index']
  #allocation1 [shape = 'u32[144,128]{1,0:T(1,128)}', space=vmem, size = 0x12000, scoped, tag = 'internal scratch']
  %s0 = inlined_call_operand.hbm [shape: f32[2,8,32,128], index: 0, kind: input, shape index: {}]
  %s1 = inlined_call_operand.hbm [shape: f32[2,4,32,128], index: 1, kind: input, shape index: {}]
  %s2 = inlined_call_operand.hbm [shape: f32[1,3,8,128], index: 2, kind: output, shape index: {}]
  %s3 = sld [smem:[#allocation0]]
  $region30: #{tpu_custom_call.1} parent=0
    _
  %s5 = ssub.s32 1, %s3
  %s6 = scalar_select 0, %s5, %s3
  $region1: #{tpu_custom_call.1} parent=0
    #allocation2 [shape = 'u8[262144]{0}', space=vmem, size = 0x40000, scoped, tag = 'input window, operand 0, single buffered']
    #allocation3 [shape = 's32[1]{0}', space=sflag, size = 0x4, scoped, tag = 'scoped memory for tpu_custom_call.1']
    #allocation4 [shape = 's32[1]{0}', space=sflag, size = 0x4, scoped, tag = 'scoped memory for tpu_custom_call.1']
    #allocation5 [shape = 'u8[131072]{0}', space=vmem, size = 0x20000, scoped, tag = 'input window, operand 1, single buffered']
    #allocation6 [shape = 's32[1]{0}', space=sflag, size = 0x4, scoped, tag = 'scoped memory for tpu_custom_call.1']
    #allocation7 [shape = 'u8[12288]{0}', space=vmem, size = 0x3000, scoped, tag = 'output window, operand 0, single buffered']
    %7 = vsyncpa [#allocation3], 0
    %8 = vsyncpa [#allocation6], 0
    %9 = vsyncpa [#allocation4], 0
    // Predicated region
    $region2: #{tpu_custom_call.1} parent=1 // pred_check
      _
    $region3: #{tpu_custom_call.1} parent=1 // pred_check_branch
      %11 = sbr.rel (0) target = $region5
    $region4: #{tpu_custom_call.1} parent=1 // pred_region
      %s12 = sadd.s32 0, 0
      %s13 = smul.u32 4, %s12
      %s15 = ssub.s32 8192, 8192
      %16 = vsyncadd [#allocation3], %s15
      %s17 = smul.addr %s13, 128
      %s18 = scalar_lea.hbm %s0, %s17
      %s19 = sshll.u32 [#allocation2], 4
      %s20 = int_to_ptr.vmem [resolvable:$true] %s19
      %25 = dma.hbm_to_vmem [thread:$0]  %s18, 8192, %s20, [#allocation3], 128, 128, 8
    $region5: #{tpu_custom_call.1} parent=1 // pred_fallthru
      _
    // Predicated region
    $region6: #{tpu_custom_call.1} parent=1 // pred_check
      _
    $region7: #{tpu_custom_call.1} parent=1 // pred_check_branch
      %27 = sbr.rel (0) target = $region9
    $region8: #{tpu_custom_call.1} parent=1 // pred_region
      %s28 = sadd.s32 0, 0
      %s29 = smul.u32 4, %s28
      %s31 = ssub.s32 4096, 4096
      %32 = vsyncadd [#allocation6], %s31
      %s33 = smul.addr %s29, 128
      %s34 = scalar_lea.hbm %s1, %s33
      %s35 = sshll.u32 [#allocation5], 4
      %s36 = int_to_ptr.vmem [resolvable:$true] %s35
      %41 = dma.hbm_to_vmem [thread:$0]  %s34, 4096, %s36, [#allocation6], 128, 128, 8
    $region9: #{tpu_custom_call.1} parent=1 // pred_fallthru
      _
    // Predicated region
    $region10: #{tpu_custom_call.1} parent=1 // pred_check
      _
    $region11: #{tpu_custom_call.1} parent=1 // pred_check_branch
      %43 = sbr.rel (0) target = $region13
    $region12: #{tpu_custom_call.1} parent=1 // pred_region
      %44 = dma.done [#allocation3], 8192
    $region13: #{tpu_custom_call.1} parent=1 // pred_fallthru
      _
    // Predicated region
    $region14: #{tpu_custom_call.1} parent=1 // pred_check
      _
    $region15: #{tpu_custom_call.1} parent=1 // pred_check_branch
      %46 = sbr.rel (0) target = $region17
    $region16: #{tpu_custom_call.1} parent=1 // pred_region
      %47 = dma.done [#allocation6], 4096
    $region17: #{tpu_custom_call.1} parent=1 // pred_fallthru
      _
    %s48 = sadd.s32 0, 0
    %s49 = smul.u32 4, %s48
    %s50 = sadd.s32 0, 0
    %s51 = smul.u32 4, %s50
    %p52 = scmp.eq.s32.totalorder 0, 0
    // Predicated region
    $region18: #{tpu_custom_call.1} parent=1 // pred_check
      %p53 = pneg %p52
    $region19: #{tpu_custom_call.1} parent=1 // pred_check_branch
      %55 = sbr.rel (%p53) target = $region21
    $region20: #{tpu_custom_call.1} parent=1 // pred_region
      %56 = vst [vmem:[#allocation7] sm:$0xff] 0.0
      %57 = vst [vmem:[#allocation7 + $0x8] sm:$0xff] 0.0
      %58 = vst [vmem:[#allocation7 + $0x10] sm:$0xff] 0.0
    $region21: #{tpu_custom_call.1} parent=1 // pred_fallthru
      _
    %v59 = vld [vmem:[#allocation2] sm:$0xff]
    %v60 = vld [vmem:[#allocation2 + $0x20] sm:$0xff]
    %v61 = vld [vmem:[#allocation2 + $0x40] sm:$0xff]
    %v62 = vld [vmem:[#allocation2 + $0x60] sm:$0xff]
    %v63 = vld [vmem:[#allocation2 + $0x100] sm:$0xff]
    %v64 = vld [vmem:[#allocation2 + $0x120] sm:$0xff]
    %v65 = vld [vmem:[#allocation2 + $0x140] sm:$0xff]
    %v66 = vld [vmem:[#allocation2 + $0x160] sm:$0xff]
    %v67 = vld [vmem:[#allocation5] sm:$0xff]
    %v68 = vld [vmem:[#allocation5 + $0x20] sm:$0xff]
    %v69 = vld [vmem:[#allocation5 + $0x40] sm:$0xff]
    %v70 = vld [vmem:[#allocation5 + $0x60] sm:$0xff]
    %v71 = vld [vmem:[#allocation5 + $0x80] sm:$0xff]
    %v72 = vld [vmem:[#allocation5 + $0xa0] sm:$0xff]
    %v73 = vld [vmem:[#allocation5 + $0xc0] sm:$0xff]
    %v74 = vld [vmem:[#allocation5 + $0xe0] sm:$0xff]
    %v75 = vmin.f32 %v61, %v69
    %v76 = vmin.f32 %v65, %v73
    %v77 = vmax.f32 %v59, %v67
    %v78 = vmax.f32 %v63, %v71
    %v79 = vsub.f32 %v75, %v77
    %v80 = vsub.f32 %v76, %v78
    %v81 = vmax.f32 %v79, 0.0
    %v82 = vmax.f32 %v80, 0.0
    %v83 = vmin.f32 %v62, %v70
    %v84 = vmin.f32 %v66, %v74
    %v85 = vmax.f32 %v60, %v68
    %v86 = vmax.f32 %v64, %v72
    %v87 = vsub.f32 %v83, %v85
    %v88 = vsub.f32 %v84, %v86
    %v89 = vmax.f32 %v87, 0.0
    %v90 = vmax.f32 %v88, 0.0
    %v91 = vmul.f32 %v81, %v89
    %v92 = vmul.f32 %v82, %v90
    %v93 = vsub.f32 %v61, %v59
    %v94 = vsub.f32 %v65, %v63
    %v95 = vsub.f32 %v62, %v60
    %v96 = vsub.f32 %v66, %v64
    %v97 = vmul.f32 %v93, %v95
    %v98 = vmul.f32 %v94, %v96
    %v99 = vsub.f32 %v69, %v67
    %v100 = vsub.f32 %v73, %v71
    %v101 = vsub.f32 %v70, %v68
    %v102 = vsub.f32 %v74, %v72
    %v103 = vmul.f32 %v99, %v101
    %v104 = vmul.f32 %v100, %v102
    %v105 = vadd.f32 %v97, %v103
    %v106 = vadd.f32 %v98, %v104
    %v107 = vsub.f32 %v105, %v91
    %v108 = vsub.f32 %v106, %v92
    %v109 = vadd.f32 %v107, 1e-07
    %v110 = vadd.f32 %v108, 1e-07
    %v111 = vrcp.pop %v109
    %v112 = vrcp.pop %v110
    %v113 = vmul.f32 %v91, %v111
    %v114 = vmul.f32 %v92, %v112
    %v115 = vand.u32 2147483647, %v59
    %v116 = vand.u32 2147483647, %v60
    %v117 = vand.u32 2147483647, %v61
    %v118 = vand.u32 2147483647, %v62
    %v119 = vand.u32 2147483647, %v63
    %v120 = vand.u32 2147483647, %v64
    %v121 = vand.u32 2147483647, %v65
    %v122 = vand.u32 2147483647, %v66
    %v123 = vsub.f32 0.0, %v115
    %v124 = vsub.f32 0.0, %v116
    %v125 = vsub.f32 0.0, %v117
    %v126 = vsub.f32 0.0, %v118
    %v127 = vsub.f32 0.0, %v119
    %v128 = vsub.f32 0.0, %v120
    %v129 = vsub.f32 0.0, %v121
    %v130 = vsub.f32 0.0, %v122
    %v131 = vmul.f32 %v123, 1.442695
    %v132 = vpow.pop %v131
    %v133 = vmul.f32 %v124, 1.442695
    %v134 = vpow.pop %v133
    %v135 = vmul.f32 %v125, 1.442695
    %v136 = vpow.pop %v135
    %v137 = vmul.f32 %v126, 1.442695
    %v138 = vpow.pop %v137
    %v139 = vmul.f32 %v127, 1.442695
    %v140 = vpow.pop %v139
    %v141 = vmul.f32 %v128, 1.442695
    %v142 = vpow.pop %v141
    %v143 = vmul.f32 %v129, 1.442695
    %v144 = vpow.pop %v143
    %v145 = vmul.f32 %v130, 1.442695
    %v146 = vpow.pop %v145
    %v147 = vadd.f32 %v132, 1.0
    %v148 = vlog2.pop %v147
    %v149 = vmul.f32 %v148, 0.6931472
    %v150 = vmul.f32 -0.5, %v132
    %v151 = vadd.f32 %v150, 1.0
    %v152 = vmul.f32 %v151, %v132
    %v153 = vand.u32 2147483647, %v132
    %vm154 = vcmp.lt.f32.partialorder %v153, 0.0004427343
    %v155 = vsel %vm154, %v152, %v149
    %v156 = vadd.f32 %v134, 1.0
    %v157 = vlog2.pop %v156
    %v158 = vmul.f32 %v157, 0.6931472
    %v159 = vmul.f32 -0.5, %v134
    %v160 = vadd.f32 %v159, 1.0
    %v161 = vmul.f32 %v160, %v134
    %v162 = vand.u32 2147483647, %v134
    %vm163 = vcmp.lt.f32.partialorder %v162, 0.0004427343
    %v164 = vsel %vm163, %v161, %v158
    %v165 = vadd.f32 %v136, 1.0
    %v166 = vlog2.pop %v165
    %v167 = vmul.f32 %v166, 0.6931472
    %v168 = vmul.f32 -0.5, %v136
    %v169 = vadd.f32 %v168, 1.0
    %v170 = vmul.f32 %v169, %v136
    %v171 = vand.u32 2147483647, %v136
    %vm172 = vcmp.lt.f32.partialorder %v171, 0.0004427343
    %v173 = vsel %vm172, %v170, %v167
    %v174 = vadd.f32 %v138, 1.0
    %v175 = vlog2.pop %v174
    %v176 = vmul.f32 %v175, 0.6931472
    %v177 = vmul.f32 -0.5, %v138
    %v178 = vadd.f32 %v177, 1.0
    %v179 = vmul.f32 %v178, %v138
    %v180 = vand.u32 2147483647, %v138
    %vm181 = vcmp.lt.f32.partialorder %v180, 0.0004427343
    %v182 = vsel %vm181, %v179, %v176
    %v183 = vadd.f32 %v140, 1.0
    %v184 = vlog2.pop %v183
    %v185 = vmul.f32 %v184, 0.6931472
    %v186 = vmul.f32 -0.5, %v140
    %v187 = vadd.f32 %v186, 1.0
    %v188 = vmul.f32 %v187, %v140
    %v189 = vand.u32 2147483647, %v140
    %vm190 = vcmp.lt.f32.partialorder %v189, 0.0004427343
    %v191 = vsel %vm190, %v188, %v185
    %v192 = vadd.f32 %v142, 1.0
    %v193 = vlog2.pop %v192
    %v194 = vmul.f32 %v193, 0.6931472
    %v195 = vmul.f32 -0.5, %v142
    %v196 = vadd.f32 %v195, 1.0
    %v197 = vmul.f32 %v196, %v142
    %v198 = vand.u32 2147483647, %v142
    %vm199 = vcmp.lt.f32.partialorder %v198, 0.0004427343
    %v200 = vsel %vm199, %v197, %v194
    %v201 = vadd.f32 %v144, 1.0
    %v202 = vlog2.pop %v201
    %v203 = vmul.f32 %v202, 0.6931472
    %v204 = vmul.f32 -0.5, %v144
    %v205 = vadd.f32 %v204, 1.0
    %v206 = vmul.f32 %v205, %v144
    %v207 = vand.u32 2147483647, %v144
    %vm208 = vcmp.lt.f32.partialorder %v207, 0.0004427343
    %v209 = vsel %vm208, %v206, %v203
    %v210 = vadd.f32 %v146, 1.0
    %v211 = vlog2.pop %v210
    %v212 = vmul.f32 %v211, 0.6931472
    %v213 = vmul.f32 -0.5, %v146
    %v214 = vadd.f32 %v213, 1.0
    %v215 = vmul.f32 %v214, %v146
    %v216 = vand.u32 2147483647, %v146
    %vm217 = vcmp.lt.f32.partialorder %v216, 0.0004427343
    %v218 = vsel %vm217, %v215, %v212
    %v219 = vfloor.f32 %v67
    %v220 = vfloor.f32 %v68
    %v221 = vfloor.f32 %v69
    %v222 = vfloor.f32 %v71
    %v223 = vfloor.f32 %v72
    %v224 = vfloor.f32 %v73
    %v225 = vsub.f32 %v67, %v219
    %v226 = vsub.f32 %v68, %v220
    %v227 = vsub.f32 %v69, %v221
    %v228 = vsub.f32 %v71, %v222
    %v229 = vsub.f32 %v72, %v223
    %v230 = vsub.f32 %v73, %v224
    %v231 = vmax.f32 %v59, 0.0
    %v232 = vmax.f32 %v60, 0.0
    %v233 = vmax.f32 %v61, 0.0
    %v234 = vmax.f32 %v63, 0.0
    %v235 = vmax.f32 %v64, 0.0
    %v236 = vmax.f32 %v65, 0.0
    %v237 = vmul.f32 %v59, %v219
    %v238 = vmul.f32 %v60, %v220
    %v239 = vmul.f32 %v61, %v221
    %v240 = vmul.f32 %v63, %v222
    %v241 = vmul.f32 %v64, %v223
    %v242 = vmul.f32 %v65, %v224
    %v243 = vsub.f32 %v231, %v237
    %v244 = vsub.f32 %v232, %v238
    %v245 = vsub.f32 %v233, %v239
    %v246 = vsub.f32 %v234, %v240
    %v247 = vsub.f32 %v235, %v241
    %v248 = vsub.f32 %v236, %v242
    %v249 = vadd.f32 %v243, %v155
    %v250 = vadd.f32 %v244, %v164
    %v251 = vadd.f32 %v245, %v173
    %v252 = vadd.f32 %v246, %v191
    %v253 = vadd.f32 %v247, %v200
    %v254 = vadd.f32 %v248, %v209
    %v255 = vmax.f32 %v62, 0.0
    %v256 = vmax.f32 %v66, 0.0
    %v257 = vmul.f32 %v60, %v219
    %v258 = vmul.f32 %v61, %v220
    %v259 = vmul.f32 %v62, %v221
    %v260 = vmul.f32 %v64, %v222
    %v261 = vmul.f32 %v65, %v223
    %v262 = vmul.f32 %v66, %v224
    %v263 = vsub.f32 %v232, %v257
    %v264 = vsub.f32 %v233, %v258
    %v265 = vsub.f32 %v255, %v259
    %v266 = vsub.f32 %v235, %v260
    %v267 = vsub.f32 %v236, %v261
    %v268 = vsub.f32 %v256, %v262
    %v269 = vsub.f32 %v263, %v60
    %v270 = vsub.f32 %v264, %v61
    %v271 = vsub.f32 %v265, %v62
    %v272 = vsub.f32 %v266, %v64
    %v273 = vsub.f32 %v267, %v65
    %v274 = vsub.f32 %v268, %v66
    %v275 = vadd.f32 %v269, %v164
    %v276 = vadd.f32 %v270, %v173
    %v277 = vadd.f32 %v271, %v182
    %v278 = vadd.f32 %v272, %v200
    %v279 = vadd.f32 %v273, %v209
    %v280 = vadd.f32 %v274, %v218
    %v281 = vsub.f32 %v275, %v249
    %v282 = vsub.f32 %v276, %v250
    %v283 = vsub.f32 %v277, %v251
    %v284 = vsub.f32 %v278, %v252
    %v285 = vsub.f32 %v279, %v253
    %v286 = vsub.f32 %v280, %v254
    %v287 = vmul.f32 %v281, %v225
    %v288 = vmul.f32 %v282, %v226
    %v289 = vmul.f32 %v283, %v227
    %v290 = vmul.f32 %v284, %v228
    %v291 = vmul.f32 %v285, %v229
    %v292 = vmul.f32 %v286, %v230
    %v293 = vadd.f32 %v249, %v287
    %v294 = vadd.f32 %v250, %v288
    %v295 = vadd.f32 %v251, %v289
    %v296 = vadd.f32 %v252, %v290
    %v297 = vadd.f32 %v253, %v291
    %v298 = vadd.f32 %v254, %v292
    %s299 = sadd.s32 0, 128
    %s300 = scalar_lea.vmem [#allocation2], %s299
    %v301 = vld [vmem:[%s300] sm:$0xff]
    %v302 = vld [vmem:[%s300 + $0x20] sm:$0xff]
    %v303 = vld [vmem:[%s300 + $0x40] sm:$0xff]
    %v304 = vld [vmem:[%s300 + $0x60] sm:$0xff]
    %v305 = vld [vmem:[%s300 + $0x100] sm:$0xff]
    %v306 = vld [vmem:[%s300 + $0x120] sm:$0xff]
    %v307 = vld [vmem:[%s300 + $0x140] sm:$0xff]
    %v308 = vld [vmem:[%s300 + $0x160] sm:$0xff]
    %v309 = vand.u32 2147483647, %v301
    %v310 = vand.u32 2147483647, %v302
    %v311 = vand.u32 2147483647, %v303
    %v312 = vand.u32 2147483647, %v304
    %v313 = vand.u32 2147483647, %v305
    %v314 = vand.u32 2147483647, %v306
    %v315 = vand.u32 2147483647, %v307
    %v316 = vand.u32 2147483647, %v308
    %v317 = vsub.f32 0.0, %v309
    %v318 = vsub.f32 0.0, %v310
    %v319 = vsub.f32 0.0, %v311
    %v320 = vsub.f32 0.0, %v312
    %v321 = vsub.f32 0.0, %v313
    %v322 = vsub.f32 0.0, %v314
    %v323 = vsub.f32 0.0, %v315
    %v324 = vsub.f32 0.0, %v316
    %v325 = vmul.f32 %v317, 1.442695
    %v326 = vpow.pop %v325
    %v327 = vmul.f32 %v318, 1.442695
    %v328 = vpow.pop %v327
    %v329 = vmul.f32 %v319, 1.442695
    %v330 = vpow.pop %v329
    %v331 = vmul.f32 %v320, 1.442695
    %v332 = vpow.pop %v331
    %v333 = vmul.f32 %v321, 1.442695
    %v334 = vpow.pop %v333
    %v335 = vmul.f32 %v322, 1.442695
    %v336 = vpow.pop %v335
    %v337 = vmul.f32 %v323, 1.442695
    %v338 = vpow.pop %v337
    %v339 = vmul.f32 %v324, 1.442695
    %v340 = vpow.pop %v339
    %v341 = vadd.f32 %v326, 1.0
    %v342 = vlog2.pop %v341
    %v343 = vmul.f32 %v342, 0.6931472
    %v344 = vmul.f32 -0.5, %v326
    %v345 = vadd.f32 %v344, 1.0
    %v346 = vmul.f32 %v345, %v326
    %v347 = vand.u32 2147483647, %v326
    %vm348 = vcmp.lt.f32.partialorder %v347, 0.0004427343
    %v349 = vsel %vm348, %v346, %v343
    %v350 = vadd.f32 %v328, 1.0
    %v351 = vlog2.pop %v350
    %v352 = vmul.f32 %v351, 0.6931472
    %v353 = vmul.f32 -0.5, %v328
    %v354 = vadd.f32 %v353, 1.0
    %v355 = vmul.f32 %v354, %v328
    %v356 = vand.u32 2147483647, %v328
    %vm357 = vcmp.lt.f32.partialorder %v356, 0.0004427343
    %v358 = vsel %vm357, %v355, %v352
    %v359 = vadd.f32 %v330, 1.0
    %v360 = vlog2.pop %v359
    %v361 = vmul.f32 %v360, 0.6931472
    %v362 = vmul.f32 -0.5, %v330
    %v363 = vadd.f32 %v362, 1.0
    %v364 = vmul.f32 %v363, %v330
    %v365 = vand.u32 2147483647, %v330
    %vm366 = vcmp.lt.f32.partialorder %v365, 0.0004427343
    %v367 = vsel %vm366, %v364, %v361
    %v368 = vadd.f32 %v332, 1.0
    %v369 = vlog2.pop %v368
    %v370 = vmul.f32 %v369, 0.6931472
    %v371 = vmul.f32 -0.5, %v332
    %v372 = vadd.f32 %v371, 1.0
    %v373 = vmul.f32 %v372, %v332
    %v374 = vand.u32 2147483647, %v332
    %vm375 = vcmp.lt.f32.partialorder %v374, 0.0004427343
    %v376 = vsel %vm375, %v373, %v370
    %v377 = vadd.f32 %v334, 1.0
    %v378 = vlog2.pop %v377
    %v379 = vmul.f32 %v378, 0.6931472
    %v380 = vmul.f32 -0.5, %v334
    %v381 = vadd.f32 %v380, 1.0
    %v382 = vmul.f32 %v381, %v334
    %v383 = vand.u32 2147483647, %v334
    %vm384 = vcmp.lt.f32.partialorder %v383, 0.0004427343
    %v385 = vsel %vm384, %v382, %v379
    %v386 = vadd.f32 %v336, 1.0
    %v387 = vlog2.pop %v386
    %v388 = vmul.f32 %v387, 0.6931472
    %v389 = vmul.f32 -0.5, %v336
    %v390 = vadd.f32 %v389, 1.0
    %v391 = vmul.f32 %v390, %v336
    %v392 = vand.u32 2147483647, %v336
    %vm393 = vcmp.lt.f32.partialorder %v392, 0.0004427343
    %v394 = vsel %vm393, %v391, %v388
    %v395 = vadd.f32 %v338, 1.0
    %v396 = vlog2.pop %v395
    %v397 = vmul.f32 %v396, 0.6931472
    %v398 = vmul.f32 -0.5, %v338
    %v399 = vadd.f32 %v398, 1.0
    %v400 = vmul.f32 %v399, %v338
    %v401 = vand.u32 2147483647, %v338
    %vm402 = vcmp.lt.f32.partialorder %v401, 0.0004427343
    %v403 = vsel %vm402, %v400, %v397
    %v404 = vadd.f32 %v340, 1.0
    %v405 = vlog2.pop %v404
    %v406 = vmul.f32 %v405, 0.6931472
    %v407 = vmul.f32 -0.5, %v340
    %v408 = vadd.f32 %v407, 1.0
    %v409 = vmul.f32 %v408, %v340
    %v410 = vand.u32 2147483647, %v340
    %vm411 = vcmp.lt.f32.partialorder %v410, 0.0004427343
    %v412 = vsel %vm411, %v409, %v406
    %v413 = vmax.f32 %v301, 0.0
    %v414 = vmax.f32 %v302, 0.0
    %v415 = vmax.f32 %v303, 0.0
    %v416 = vmax.f32 %v304, 0.0
    %v417 = vmax.f32 %v305, 0.0
    %v418 = vmax.f32 %v306, 0.0
    %v419 = vmax.f32 %v307, 0.0
    %v420 = vmax.f32 %v308, 0.0
    %v421 = vmul.f32 %v301, %v67
    %v422 = vmul.f32 %v302, %v68
    %v423 = vmul.f32 %v303, %v69
    %v424 = vmul.f32 %v304, %v70
    %v425 = vmul.f32 %v305, %v71
    %v426 = vmul.f32 %v306, %v72
    %v427 = vmul.f32 %v307, %v73
    %v428 = vmul.f32 %v308, %v74
    %v429 = vsub.f32 %v413, %v421
    %v430 = vsub.f32 %v414, %v422
    %v431 = vsub.f32 %v415, %v423
    %v432 = vsub.f32 %v416, %v424
    %v433 = vsub.f32 %v417, %v425
    %v434 = vsub.f32 %v418, %v426
    %v435 = vsub.f32 %v419, %v427
    %v436 = vsub.f32 %v420, %v428
    %v437 = vadd.f32 %v429, %v349
    %v438 = vadd.f32 %v430, %v358
    %v439 = vadd.f32 %v431, %v367
    %v440 = vadd.f32 %v432, %v376
    %v441 = vadd.f32 %v433, %v385
    %v442 = vadd.f32 %v434, %v394
    %v443 = vadd.f32 %v435, %v403
    %v444 = vadd.f32 %v436, %v412
    %v445 = vadd.f32 %v113, %v114
    %v446 = vadd.f32 %v445, 0.0
    %v447 = vadd.f32 %v437, %v438
    %v448 = vadd.f32 %v447, %v439
    %v449 = vadd.f32 %v448, %v440
    %v450 = vadd.f32 %v449, %v441
    %v451 = vadd.f32 %v450, %v442
    %v452 = vadd.f32 %v451, %v443
    %v453 = vadd.f32 %v452, %v444
    %v454 = vadd.f32 %v453, 0.0
    %v455 = vadd.f32 %v293, %v294
    %v456 = vadd.f32 %v455, %v295
    %v457 = vadd.f32 %v456, %v296
    %v458 = vadd.f32 %v457, %v297
    %v459 = vadd.f32 %v458, %v298
    %v460 = vadd.f32 %v459, 0.0
    %s461 = scalar_lea.vmem [#allocation2], 8
    %v462 = vld [vmem:[%s461] sm:$0xff]
    %v463 = vld [vmem:[%s461 + $0x20] sm:$0xff]
    %v464 = vld [vmem:[%s461 + $0x40] sm:$0xff]
    %v465 = vld [vmem:[%s461 + $0x60] sm:$0xff]
    %v466 = vld [vmem:[%s461 + $0x100] sm:$0xff]
    %v467 = vld [vmem:[%s461 + $0x120] sm:$0xff]
    %v468 = vld [vmem:[%s461 + $0x140] sm:$0xff]
    %v469 = vld [vmem:[%s461 + $0x160] sm:$0xff]
    %s470 = scalar_lea.vmem [#allocation5], 8
    %v471 = vld [vmem:[%s470] sm:$0xff]
    %v472 = vld [vmem:[%s470 + $0x20] sm:$0xff]
    %v473 = vld [vmem:[%s470 + $0x40] sm:$0xff]
    %v474 = vld [vmem:[%s470 + $0x60] sm:$0xff]
    %v475 = vld [vmem:[%s470 + $0x80] sm:$0xff]
    %v476 = vld [vmem:[%s470 + $0xa0] sm:$0xff]
    %v477 = vld [vmem:[%s470 + $0xc0] sm:$0xff]
    %v478 = vld [vmem:[%s470 + $0xe0] sm:$0xff]
    %v479 = vmin.f32 %v464, %v473
    %v480 = vmin.f32 %v468, %v477
    %v481 = vmax.f32 %v462, %v471
    %v482 = vmax.f32 %v466, %v475
    %v483 = vsub.f32 %v479, %v481
    %v484 = vsub.f32 %v480, %v482
    %v485 = vmax.f32 %v483, 0.0
    %v486 = vmax.f32 %v484, 0.0
    %v487 = vmin.f32 %v465, %v474
    %v488 = vmin.f32 %v469, %v478
    %v489 = vmax.f32 %v463, %v472
    %v490 = vmax.f32 %v467, %v476
    %v491 = vsub.f32 %v487, %v489
    %v492 = vsub.f32 %v488, %v490
    %v493 = vmax.f32 %v491, 0.0
    %v494 = vmax.f32 %v492, 0.0
    %v495 = vmul.f32 %v485, %v493
    %v496 = vmul.f32 %v486, %v494
    %v497 = vsub.f32 %v464, %v462
    %v498 = vsub.f32 %v468, %v466
    %v499 = vsub.f32 %v465, %v463
    %v500 = vsub.f32 %v469, %v467
    %v501 = vmul.f32 %v497, %v499
    %v502 = vmul.f32 %v498, %v500
    %v503 = vsub.f32 %v473, %v471
    %v504 = vsub.f32 %v477, %v475
    %v505 = vsub.f32 %v474, %v472
    %v506 = vsub.f32 %v478, %v476
    %v507 = vmul.f32 %v503, %v505
    %v508 = vmul.f32 %v504, %v506
    %v509 = vadd.f32 %v501, %v507
    %v510 = vadd.f32 %v502, %v508
    %v511 = vsub.f32 %v509, %v495
    %v512 = vsub.f32 %v510, %v496
    %v513 = vadd.f32 %v511, 1e-07
    %v514 = vadd.f32 %v512, 1e-07
    %v515 = vrcp.pop %v513
    %v516 = vrcp.pop %v514
    %v517 = vmul.f32 %v495, %v515
    %v518 = vmul.f32 %v496, %v516
    %v519 = vand.u32 2147483647, %v462
    %v520 = vand.u32 2147483647, %v463
    %v521 = vand.u32 2147483647, %v464
    %v522 = vand.u32 2147483647, %v465
    %v523 = vand.u32 2147483647, %v466
    %v524 = vand.u32 2147483647, %v467
    %v525 = vand.u32 2147483647, %v468
    %v526 = vand.u32 2147483647, %v469
    %v527 = vsub.f32 0.0, %v519
    %v528 = vsub.f32 0.0, %v520
    %v529 = vsub.f32 0.0, %v521
    %v530 = vsub.f32 0.0, %v522
    %v531 = vsub.f32 0.0, %v523
    %v532 = vsub.f32 0.0, %v524
    %v533 = vsub.f32 0.0, %v525
    %v534 = vsub.f32 0.0, %v526
    %v535 = vmul.f32 %v527, 1.442695
    %v536 = vpow.pop %v535
    %v537 = vmul.f32 %v528, 1.442695
    %v538 = vpow.pop %v537
    %v539 = vmul.f32 %v529, 1.442695
    %v540 = vpow.pop %v539
    %v541 = vmul.f32 %v530, 1.442695
    %v542 = vpow.pop %v541
    %v543 = vmul.f32 %v531, 1.442695
    %v544 = vpow.pop %v543
    %v545 = vmul.f32 %v532, 1.442695
    %v546 = vpow.pop %v545
    %v547 = vmul.f32 %v533, 1.442695
    %v548 = vpow.pop %v547
    %v549 = vmul.f32 %v534, 1.442695
    %v550 = vpow.pop %v549
    %v551 = vadd.f32 %v536, 1.0
    %v552 = vlog2.pop %v551
    %v553 = vmul.f32 %v552, 0.6931472
    %v554 = vmul.f32 -0.5, %v536
    %v555 = vadd.f32 %v554, 1.0
    %v556 = vmul.f32 %v555, %v536
    %v557 = vand.u32 2147483647, %v536
    %vm558 = vcmp.lt.f32.partialorder %v557, 0.0004427343
    %v559 = vsel %vm558, %v556, %v553
    %v560 = vadd.f32 %v538, 1.0
    %v561 = vlog2.pop %v560
    %v562 = vmul.f32 %v561, 0.6931472
    %v563 = vmul.f32 -0.5, %v538
    %v564 = vadd.f32 %v563, 1.0
    %v565 = vmul.f32 %v564, %v538
    %v566 = vand.u32 2147483647, %v538
    %vm567 = vcmp.lt.f32.partialorder %v566, 0.0004427343
    %v568 = vsel %vm567, %v565, %v562
    %v569 = vadd.f32 %v540, 1.0
    %v570 = vlog2.pop %v569
    %v571 = vmul.f32 %v570, 0.6931472
    %v572 = vmul.f32 -0.5, %v540
    %v573 = vadd.f32 %v572, 1.0
    %v574 = vmul.f32 %v573, %v540
    %v575 = vand.u32 2147483647, %v540
    %vm576 = vcmp.lt.f32.partialorder %v575, 0.0004427343
    %v577 = vsel %vm576, %v574, %v571
    %v578 = vadd.f32 %v542, 1.0
    %v579 = vlog2.pop %v578
    %v580 = vmul.f32 %v579, 0.6931472
    %v581 = vmul.f32 -0.5, %v542
    %v582 = vadd.f32 %v581, 1.0
    %v583 = vmul.f32 %v582, %v542
    %v584 = vand.u32 2147483647, %v542
    %vm585 = vcmp.lt.f32.partialorder %v584, 0.0004427343
    %v586 = vsel %vm585, %v583, %v580
    %v587 = vadd.f32 %v544, 1.0
    %v588 = vlog2.pop %v587
    %v589 = vmul.f32 %v588, 0.6931472
    %v590 = vmul.f32 -0.5, %v544
    %v591 = vadd.f32 %v590, 1.0
    %v592 = vmul.f32 %v591, %v544
    %v593 = vand.u32 2147483647, %v544
    %vm594 = vcmp.lt.f32.partialorder %v593, 0.0004427343
    %v595 = vsel %vm594, %v592, %v589
    %v596 = vadd.f32 %v546, 1.0
    %v597 = vlog2.pop %v596
    %v598 = vmul.f32 %v597, 0.6931472
    %v599 = vmul.f32 -0.5, %v546
    %v600 = vadd.f32 %v599, 1.0
    %v601 = vmul.f32 %v600, %v546
    %v602 = vand.u32 2147483647, %v546
    %vm603 = vcmp.lt.f32.partialorder %v602, 0.0004427343
    %v604 = vsel %vm603, %v601, %v598
    %v605 = vadd.f32 %v548, 1.0
    %v606 = vlog2.pop %v605
    %v607 = vmul.f32 %v606, 0.6931472
    %v608 = vmul.f32 -0.5, %v548
    %v609 = vadd.f32 %v608, 1.0
    %v610 = vmul.f32 %v609, %v548
    %v611 = vand.u32 2147483647, %v548
    %vm612 = vcmp.lt.f32.partialorder %v611, 0.0004427343
    %v613 = vsel %vm612, %v610, %v607
    %v614 = vadd.f32 %v550, 1.0
    %v615 = vlog2.pop %v614
    %v616 = vmul.f32 %v615, 0.6931472
    %v617 = vmul.f32 -0.5, %v550
    %v618 = vadd.f32 %v617, 1.0
    %v619 = vmul.f32 %v618, %v550
    %v620 = vand.u32 2147483647, %v550
    %vm621 = vcmp.lt.f32.partialorder %v620, 0.0004427343
    %v622 = vsel %vm621, %v619, %v616
    %v623 = vfloor.f32 %v471
    %v624 = vfloor.f32 %v472
    %v625 = vfloor.f32 %v473
    %v626 = vfloor.f32 %v475
    %v627 = vfloor.f32 %v476
    %v628 = vfloor.f32 %v477
    %v629 = vsub.f32 %v471, %v623
    %v630 = vsub.f32 %v472, %v624
    %v631 = vsub.f32 %v473, %v625
    %v632 = vsub.f32 %v475, %v626
    %v633 = vsub.f32 %v476, %v627
    %v634 = vsub.f32 %v477, %v628
    %v635 = vmax.f32 %v462, 0.0
    %v636 = vmax.f32 %v463, 0.0
    %v637 = vmax.f32 %v464, 0.0
    %v638 = vmax.f32 %v466, 0.0
    %v639 = vmax.f32 %v467, 0.0
    %v640 = vmax.f32 %v468, 0.0
    %v641 = vmul.f32 %v462, %v623
    %v642 = vmul.f32 %v463, %v624
    %v643 = vmul.f32 %v464, %v625
    %v644 = vmul.f32 %v466, %v626
    %v645 = vmul.f32 %v467, %v627
    %v646 = vmul.f32 %v468, %v628
    %v647 = vsub.f32 %v635, %v641
    %v648 = vsub.f32 %v636, %v642
    %v649 = vsub.f32 %v637, %v643
    %v650 = vsub.f32 %v638, %v644
    %v651 = vsub.f32 %v639, %v645
    %v652 = vsub.f32 %v640, %v646
    %v653 = vadd.f32 %v647, %v559
    %v654 = vadd.f32 %v648, %v568
    %v655 = vadd.f32 %v649, %v577
    %v656 = vadd.f32 %v650, %v595
    %v657 = vadd.f32 %v651, %v604
    %v658 = vadd.f32 %v652, %v613
    %v659 = vmax.f32 %v465, 0.0
    %v660 = vmax.f32 %v469, 0.0
    %v661 = vmul.f32 %v463, %v623
    %v662 = vmul.f32 %v464, %v624
    %v663 = vmul.f32 %v465, %v625
    %v664 = vmul.f32 %v467, %v626
    %v665 = vmul.f32 %v468, %v627
    %v666 = vmul.f32 %v469, %v628
    %v667 = vsub.f32 %v636, %v661
    %v668 = vsub.f32 %v637, %v662
    %v669 = vsub.f32 %v659, %v663
    %v670 = vsub.f32 %v639, %v664
    %v671 = vsub.f32 %v640, %v665
    %v672 = vsub.f32 %v660, %v666
    %v673 = vsub.f32 %v667, %v463
    %v674 = vsub.f32 %v668, %v464
    %v675 = vsub.f32 %v669, %v465
    %v676 = vsub.f32 %v670, %v467
    %v677 = vsub.f32 %v671, %v468
    %v678 = vsub.f32 %v672, %v469
    %v679 = vadd.f32 %v673, %v568
    %v680 = vadd.f32 %v674, %v577
    %v681 = vadd.f32 %v675, %v586
    %v682 = vadd.f32 %v676, %v604
    %v683 = vadd.f32 %v677, %v613
    %v684 = vadd.f32 %v678, %v622
    %v685 = vsub.f32 %v679, %v653
    %v686 = vsub.f32 %v680, %v654
    %v687 = vsub.f32 %v681, %v655
    %v688 = vsub.f32 %v682, %v656
    %v689 = vsub.f32 %v683, %v657
    %v690 = vsub.f32 %v684, %v658
    %v691 = vmul.f32 %v685, %v629
    %v692 = vmul.f32 %v686, %v630
    %v693 = vmul.f32 %v687, %v631
    %v694 = vmul.f32 %v688, %v632
    %v695 = vmul.f32 %v689, %v633
    %v696 = vmul.f32 %v690, %v634
    %v697 = vadd.f32 %v653, %v691
    %v698 = vadd.f32 %v654, %v692
    %v699 = vadd.f32 %v655, %v693
    %v700 = vadd.f32 %v656, %v694
    %v701 = vadd.f32 %v657, %v695
    %v702 = vadd.f32 %v658, %v696
    %s703 = sadd.s32 8, 128
    %s704 = scalar_lea.vmem [#allocation2], %s703
    %v705 = vld [vmem:[%s704] sm:$0xff]
    %v706 = vld [vmem:[%s704 + $0x20] sm:$0xff]
    %v707 = vld [vmem:[%s704 + $0x40] sm:$0xff]
    %v708 = vld [vmem:[%s704 + $0x60] sm:$0xff]
    %v709 = vld [vmem:[%s704 + $0x100] sm:$0xff]
    %v710 = vld [vmem:[%s704 + $0x120] sm:$0xff]
    %v711 = vld [vmem:[%s704 + $0x140] sm:$0xff]
    %v712 = vld [vmem:[%s704 + $0x160] sm:$0xff]
    %v713 = vand.u32 2147483647, %v705
    %v714 = vand.u32 2147483647, %v706
    %v715 = vand.u32 2147483647, %v707
    %v716 = vand.u32 2147483647, %v708
    %v717 = vand.u32 2147483647, %v709
    %v718 = vand.u32 2147483647, %v710
    %v719 = vand.u32 2147483647, %v711
    %v720 = vand.u32 2147483647, %v712
    %v721 = vsub.f32 0.0, %v713
    %v722 = vsub.f32 0.0, %v714
    %v723 = vsub.f32 0.0, %v715
    %v724 = vsub.f32 0.0, %v716
    %v725 = vsub.f32 0.0, %v717
    %v726 = vsub.f32 0.0, %v718
    %v727 = vsub.f32 0.0, %v719
    %v728 = vsub.f32 0.0, %v720
    %v729 = vmul.f32 %v721, 1.442695
    %v730 = vpow.pop %v729
    %v731 = vmul.f32 %v722, 1.442695
    %v732 = vpow.pop %v731
    %v733 = vmul.f32 %v723, 1.442695
    %v734 = vpow.pop %v733
    %v735 = vmul.f32 %v724, 1.442695
    %v736 = vpow.pop %v735
    %v737 = vmul.f32 %v725, 1.442695
    %v738 = vpow.pop %v737
    %v739 = vmul.f32 %v726, 1.442695
    %v740 = vpow.pop %v739
    %v741 = vmul.f32 %v727, 1.442695
    %v742 = vpow.pop %v741
    %v743 = vmul.f32 %v728, 1.442695
    %v744 = vpow.pop %v743
    %v745 = vadd.f32 %v730, 1.0
    %v746 = vlog2.pop %v745
    %v747 = vmul.f32 %v746, 0.6931472
    %v748 = vmul.f32 -0.5, %v730
    %v749 = vadd.f32 %v748, 1.0
    %v750 = vmul.f32 %v749, %v730
    %v751 = vand.u32 2147483647, %v730
    %vm752 = vcmp.lt.f32.partialorder %v751, 0.0004427343
    %v753 = vsel %vm752, %v750, %v747
    %v754 = vadd.f32 %v732, 1.0
    %v755 = vlog2.pop %v754
    %v756 = vmul.f32 %v755, 0.6931472
    %v757 = vmul.f32 -0.5, %v732
    %v758 = vadd.f32 %v757, 1.0
    %v759 = vmul.f32 %v758, %v732
    %v760 = vand.u32 2147483647, %v732
    %vm761 = vcmp.lt.f32.partialorder %v760, 0.0004427343
    %v762 = vsel %vm761, %v759, %v756
    %v763 = vadd.f32 %v734, 1.0
    %v764 = vlog2.pop %v763
    %v765 = vmul.f32 %v764, 0.6931472
    %v766 = vmul.f32 -0.5, %v734
    %v767 = vadd.f32 %v766, 1.0
    %v768 = vmul.f32 %v767, %v734
    %v769 = vand.u32 2147483647, %v734
    %vm770 = vcmp.lt.f32.partialorder %v769, 0.0004427343
    %v771 = vsel %vm770, %v768, %v765
    %v772 = vadd.f32 %v736, 1.0
    %v773 = vlog2.pop %v772
    %v774 = vmul.f32 %v773, 0.6931472
    %v775 = vmul.f32 -0.5, %v736
    %v776 = vadd.f32 %v775, 1.0
    %v777 = vmul.f32 %v776, %v736
    %v778 = vand.u32 2147483647, %v736
    %vm779 = vcmp.lt.f32.partialorder %v778, 0.0004427343
    %v780 = vsel %vm779, %v777, %v774
    %v781 = vadd.f32 %v738, 1.0
    %v782 = vlog2.pop %v781
    %v783 = vmul.f32 %v782, 0.6931472
    %v784 = vmul.f32 -0.5, %v738
    %v785 = vadd.f32 %v784, 1.0
    %v786 = vmul.f32 %v785, %v738
    %v787 = vand.u32 2147483647, %v738
    %vm788 = vcmp.lt.f32.partialorder %v787, 0.0004427343
    %v789 = vsel %vm788, %v786, %v783
    %v790 = vadd.f32 %v740, 1.0
    %v791 = vlog2.pop %v790
    %v792 = vmul.f32 %v791, 0.6931472
    %v793 = vmul.f32 -0.5, %v740
    %v794 = vadd.f32 %v793, 1.0
    %v795 = vmul.f32 %v794, %v740
    %v796 = vand.u32 2147483647, %v740
    %vm797 = vcmp.lt.f32.partialorder %v796, 0.0004427343
    %v798 = vsel %vm797, %v795, %v792
    %v799 = vadd.f32 %v742, 1.0
    %v800 = vlog2.pop %v799
    %v801 = vmul.f32 %v800, 0.6931472
    %v802 = vmul.f32 -0.5, %v742
    %v803 = vadd.f32 %v802, 1.0
    %v804 = vmul.f32 %v803, %v742
    %v805 = vand.u32 2147483647, %v742
    %vm806 = vcmp.lt.f32.partialorder %v805, 0.0004427343
    %v807 = vsel %vm806, %v804, %v801
    %v808 = vadd.f32 %v744, 1.0
    %v809 = vlog2.pop %v808
    %v810 = vmul.f32 %v809, 0.6931472
    %v811 = vmul.f32 -0.5, %v744
    %v812 = vadd.f32 %v811, 1.0
    %v813 = vmul.f32 %v812, %v744
    %v814 = vand.u32 2147483647, %v744
    %vm815 = vcmp.lt.f32.partialorder %v814, 0.0004427343
    %v816 = vsel %vm815, %v813, %v810
    %v817 = vmax.f32 %v705, 0.0
    %v818 = vmax.f32 %v706, 0.0
    %v819 = vmax.f32 %v707, 0.0
    %v820 = vmax.f32 %v708, 0.0
    %v821 = vmax.f32 %v709, 0.0
    %v822 = vmax.f32 %v710, 0.0
    %v823 = vmax.f32 %v711, 0.0
    %v824 = vmax.f32 %v712, 0.0
    %v825 = vmul.f32 %v705, %v471
    %v826 = vmul.f32 %v706, %v472
    %v827 = vmul.f32 %v707, %v473
    %v828 = vmul.f32 %v708, %v474
    %v829 = vmul.f32 %v709, %v475
    %v830 = vmul.f32 %v710, %v476
    %v831 = vmul.f32 %v711, %v477
    %v832 = vmul.f32 %v712, %v478
    %v833 = vsub.f32 %v817, %v825
    %v834 = vsub.f32 %v818, %v826
    %v835 = vsub.f32 %v819, %v827
    %v836 = vsub.f32 %v820, %v828
    %v837 = vsub.f32 %v821, %v829
    %v838 = vsub.f32 %v822, %v830
    %v839 = vsub.f32 %v823, %v831
    %v840 = vsub.f32 %v824, %v832
    %v841 = vadd.f32 %v833, %v753
    %v842 = vadd.f32 %v834, %v762
    %v843 = vadd.f32 %v835, %v771
    %v844 = vadd.f32 %v836, %v780
    %v845 = vadd.f32 %v837, %v789
    %v846 = vadd.f32 %v838, %v798
    %v847 = vadd.f32 %v839, %v807
    %v848 = vadd.f32 %v840, %v816
    %v849 = vadd.f32 %v517, %v518
    %v850 = vadd.f32 %v446, %v849
    %v851 = vadd.f32 %v841, %v842
    %v852 = vadd.f32 %v851, %v843
    %v853 = vadd.f32 %v852, %v844
    %v854 = vadd.f32 %v853, %v845
    %v855 = vadd.f32 %v854, %v846
    %v856 = vadd.f32 %v855, %v847
    %v857 = vadd.f32 %v856, %v848
    %v858 = vadd.f32 %v454, %v857
    %v859 = vadd.f32 %v697, %v698
    %v860 = vadd.f32 %v859, %v699
    %v861 = vadd.f32 %v860, %v700
    %v862 = vadd.f32 %v861, %v701
    %v863 = vadd.f32 %v862, %v702
    %v864 = vadd.f32 %v460, %v863
    %s865 = scalar_lea.vmem [#allocation2], 16
    %v866 = vld [vmem:[%s865] sm:$0xff]
    %v867 = vld [vmem:[%s865 + $0x20] sm:$0xff]
    %v868 = vld [vmem:[%s865 + $0x40] sm:$0xff]
    %v869 = vld [vmem:[%s865 + $0x60] sm:$0xff]
    %v870 = vld [vmem:[%s865 + $0x100] sm:$0xff]
    %v871 = vld [vmem:[%s865 + $0x120] sm:$0xff]
    %v872 = vld [vmem:[%s865 + $0x140] sm:$0xff]
    %v873 = vld [vmem:[%s865 + $0x160] sm:$0xff]
    %s874 = scalar_lea.vmem [#allocation5], 16
    %v875 = vld [vmem:[%s874] sm:$0xff]
    %v876 = vld [vmem:[%s874 + $0x20] sm:$0xff]
    %v877 = vld [vmem:[%s874 + $0x40] sm:$0xff]
    %v878 = vld [vmem:[%s874 + $0x60] sm:$0xff]
    %v879 = vld [vmem:[%s874 + $0x80] sm:$0xff]
    %v880 = vld [vmem:[%s874 + $0xa0] sm:$0xff]
    %v881 = vld [vmem:[%s874 + $0xc0] sm:$0xff]
    %v882 = vld [vmem:[%s874 + $0xe0] sm:$0xff]
    %v883 = vmin.f32 %v868, %v877
    %v884 = vmin.f32 %v872, %v881
    %v885 = vmax.f32 %v866, %v875
    %v886 = vmax.f32 %v870, %v879
    %v887 = vsub.f32 %v883, %v885
    %v888 = vsub.f32 %v884, %v886
    %v889 = vmax.f32 %v887, 0.0
    %v890 = vmax.f32 %v888, 0.0
    %v891 = vmin.f32 %v869, %v878
    %v892 = vmin.f32 %v873, %v882
    %v893 = vmax.f32 %v867, %v876
    %v894 = vmax.f32 %v871, %v880
    %v895 = vsub.f32 %v891, %v893
    %v896 = vsub.f32 %v892, %v894
    %v897 = vmax.f32 %v895, 0.0
    %v898 = vmax.f32 %v896, 0.0
    %v899 = vmul.f32 %v889, %v897
    %v900 = vmul.f32 %v890, %v898
    %v901 = vsub.f32 %v868, %v866
    %v902 = vsub.f32 %v872, %v870
    %v903 = vsub.f32 %v869, %v867
    %v904 = vsub.f32 %v873, %v871
    %v905 = vmul.f32 %v901, %v903
    %v906 = vmul.f32 %v902, %v904
    %v907 = vsub.f32 %v877, %v875
    %v908 = vsub.f32 %v881, %v879
    %v909 = vsub.f32 %v878, %v876
    %v910 = vsub.f32 %v882, %v880
    %v911 = vmul.f32 %v907, %v909
    %v912 = vmul.f32 %v908, %v910
    %v913 = vadd.f32 %v905, %v911
    %v914 = vadd.f32 %v906, %v912
    %v915 = vsub.f32 %v913, %v899
    %v916 = vsub.f32 %v914, %v900
    %v917 = vadd.f32 %v915, 1e-07
    %v918 = vadd.f32 %v916, 1e-07
    %v919 = vrcp.pop %v917
    %v920 = vrcp.pop %v918
    %v921 = vmul.f32 %v899, %v919
    %v922 = vmul.f32 %v900, %v920
    %v923 = vand.u32 2147483647, %v866
    %v924 = vand.u32 2147483647, %v867
    %v925 = vand.u32 2147483647, %v868
    %v926 = vand.u32 2147483647, %v869
    %v927 = vand.u32 2147483647, %v870
    %v928 = vand.u32 2147483647, %v871
    %v929 = vand.u32 2147483647, %v872
    %v930 = vand.u32 2147483647, %v873
    %v931 = vsub.f32 0.0, %v923
    %v932 = vsub.f32 0.0, %v924
    %v933 = vsub.f32 0.0, %v925
    %v934 = vsub.f32 0.0, %v926
    %v935 = vsub.f32 0.0, %v927
    %v936 = vsub.f32 0.0, %v928
    %v937 = vsub.f32 0.0, %v929
    %v938 = vsub.f32 0.0, %v930
    %v939 = vmul.f32 %v931, 1.442695
    %v940 = vpow.pop %v939
    %v941 = vmul.f32 %v932, 1.442695
    %v942 = vpow.pop %v941
    %v943 = vmul.f32 %v933, 1.442695
    %v944 = vpow.pop %v943
    %v945 = vmul.f32 %v934, 1.442695
    %v946 = vpow.pop %v945
    %v947 = vmul.f32 %v935, 1.442695
    %v948 = vpow.pop %v947
    %v949 = vmul.f32 %v936, 1.442695
    %v950 = vpow.pop %v949
    %v951 = vmul.f32 %v937, 1.442695
    %v952 = vpow.pop %v951
    %v953 = vmul.f32 %v938, 1.442695
    %v954 = vpow.pop %v953
    %v955 = vadd.f32 %v940, 1.0
    %v956 = vlog2.pop %v955
    %v957 = vmul.f32 %v956, 0.6931472
    %v958 = vmul.f32 -0.5, %v940
    %v959 = vadd.f32 %v958, 1.0
    %v960 = vmul.f32 %v959, %v940
    %v961 = vand.u32 2147483647, %v940
    %vm962 = vcmp.lt.f32.partialorder %v961, 0.0004427343
    %v963 = vsel %vm962, %v960, %v957
    %v964 = vadd.f32 %v942, 1.0
    %v965 = vlog2.pop %v964
    %v966 = vmul.f32 %v965, 0.6931472
    %v967 = vmul.f32 -0.5, %v942
    %v968 = vadd.f32 %v967, 1.0
    %v969 = vmul.f32 %v968, %v942
    %v970 = vand.u32 2147483647, %v942
    %vm971 = vcmp.lt.f32.partialorder %v970, 0.0004427343
    %v972 = vsel %vm971, %v969, %v966
    %v973 = vadd.f32 %v944, 1.0
    %v974 = vlog2.pop %v973
    %v975 = vmul.f32 %v974, 0.6931472
    %v976 = vmul.f32 -0.5, %v944
    %v977 = vadd.f32 %v976, 1.0
    %v978 = vmul.f32 %v977, %v944
    %v979 = vand.u32 2147483647, %v944
    %vm980 = vcmp.lt.f32.partialorder %v979, 0.0004427343
    %v981 = vsel %vm980, %v978, %v975
    %v982 = vadd.f32 %v946, 1.0
    %v983 = vlog2.pop %v982
    %v984 = vmul.f32 %v983, 0.6931472
    %v985 = vmul.f32 -0.5, %v946
    %v986 = vadd.f32 %v985, 1.0
    %v987 = vmul.f32 %v986, %v946
    %v988 = vand.u32 2147483647, %v946
    %vm989 = vcmp.lt.f32.partialorder %v988, 0.0004427343
    %v990 = vsel %vm989, %v987, %v984
    %v991 = vadd.f32 %v948, 1.0
    %v992 = vlog2.pop %v991
    %v993 = vmul.f32 %v992, 0.6931472
    %v994 = vmul.f32 -0.5, %v948
    %v995 = vadd.f32 %v994, 1.0
    %v996 = vmul.f32 %v995, %v948
    %v997 = vand.u32 2147483647, %v948
    %vm998 = vcmp.lt.f32.partialorder %v997, 0.0004427343
    %v999 = vsel %vm998, %v996, %v993
    %v1000 = vadd.f32 %v950, 1.0
    %v1001 = vlog2.pop %v1000
    %v1002 = vmul.f32 %v1001, 0.6931472
    %v1003 = vmul.f32 -0.5, %v950
    %v1004 = vadd.f32 %v1003, 1.0
    %v1005 = vmul.f32 %v1004, %v950
    %v1006 = vand.u32 2147483647, %v950
    %vm1007 = vcmp.lt.f32.partialorder %v1006, 0.0004427343
    %v1008 = vsel %vm1007, %v1005, %v1002
    %v1009 = vadd.f32 %v952, 1.0
    %v1010 = vlog2.pop %v1009
    %v1011 = vmul.f32 %v1010, 0.6931472
    %v1012 = vmul.f32 -0.5, %v952
    %v1013 = vadd.f32 %v1012, 1.0
    %v1014 = vmul.f32 %v1013, %v952
    %v1015 = vand.u32 2147483647, %v952
    %vm1016 = vcmp.lt.f32.partialorder %v1015, 0.0004427343
    %v1017 = vsel %vm1016, %v1014, %v1011
    %v1018 = vadd.f32 %v954, 1.0
    %v1019 = vlog2.pop %v1018
    %v1020 = vmul.f32 %v1019, 0.6931472
    %v1021 = vmul.f32 -0.5, %v954
    %v1022 = vadd.f32 %v1021, 1.0
    %v1023 = vmul.f32 %v1022, %v954
    %v1024 = vand.u32 2147483647, %v954
    %vm1025 = vcmp.lt.f32.partialorder %v1024, 0.0004427343
    %v1026 = vsel %vm1025, %v1023, %v1020
    %v1027 = vfloor.f32 %v875
    %v1028 = vfloor.f32 %v876
    %v1029 = vfloor.f32 %v877
    %v1030 = vfloor.f32 %v879
    %v1031 = vfloor.f32 %v880
    %v1032 = vfloor.f32 %v881
    %v1033 = vsub.f32 %v875, %v1027
    %v1034 = vsub.f32 %v876, %v1028
    %v1035 = vsub.f32 %v877, %v1029
    %v1036 = vsub.f32 %v879, %v1030
    %v1037 = vsub.f32 %v880, %v1031
    %v1038 = vsub.f32 %v881, %v1032
    %v1039 = vmax.f32 %v866, 0.0
    %v1040 = vmax.f32 %v867, 0.0
    %v1041 = vmax.f32 %v868, 0.0
    %v1042 = vmax.f32 %v870, 0.0
    %v1043 = vmax.f32 %v871, 0.0
    %v1044 = vmax.f32 %v872, 0.0
    %v1045 = vmul.f32 %v866, %v1027
    %v1046 = vmul.f32 %v867, %v1028
    %v1047 = vmul.f32 %v868, %v1029
    %v1048 = vmul.f32 %v870, %v1030
    %v1049 = vmul.f32 %v871, %v1031
    %v1050 = vmul.f32 %v872, %v1032
    %v1051 = vsub.f32 %v1039, %v1045
    %v1052 = vsub.f32 %v1040, %v1046
    %v1053 = vsub.f32 %v1041, %v1047
    %v1054 = vsub.f32 %v1042, %v1048
    %v1055 = vsub.f32 %v1043, %v1049
    %v1056 = vsub.f32 %v1044, %v1050
    %v1057 = vadd.f32 %v1051, %v963
    %v1058 = vadd.f32 %v1052, %v972
    %v1059 = vadd.f32 %v1053, %v981
    %v1060 = vadd.f32 %v1054, %v999
    %v1061 = vadd.f32 %v1055, %v1008
    %v1062 = vadd.f32 %v1056, %v1017
    %v1063 = vmax.f32 %v869, 0.0
    %v1064 = vmax.f32 %v873, 0.0
    %v1065 = vmul.f32 %v867, %v1027
    %v1066 = vmul.f32 %v868, %v1028
    %v1067 = vmul.f32 %v869, %v1029
    %v1068 = vmul.f32 %v871, %v1030
    %v1069 = vmul.f32 %v872, %v1031
    %v1070 = vmul.f32 %v873, %v1032
    %v1071 = vsub.f32 %v1040, %v1065
    %v1072 = vsub.f32 %v1041, %v1066
    %v1073 = vsub.f32 %v1063, %v1067
    %v1074 = vsub.f32 %v1043, %v1068
    %v1075 = vsub.f32 %v1044, %v1069
    %v1076 = vsub.f32 %v1064, %v1070
    %v1077 = vsub.f32 %v1071, %v867
    %v1078 = vsub.f32 %v1072, %v868
    %v1079 = vsub.f32 %v1073, %v869
    %v1080 = vsub.f32 %v1074, %v871
    %v1081 = vsub.f32 %v1075, %v872
    %v1082 = vsub.f32 %v1076, %v873
    %v1083 = vadd.f32 %v1077, %v972
    %v1084 = vadd.f32 %v1078, %v981
    %v1085 = vadd.f32 %v1079, %v990
    %v1086 = vadd.f32 %v1080, %v1008
    %v1087 = vadd.f32 %v1081, %v1017
    %v1088 = vadd.f32 %v1082, %v1026
    %v1089 = vsub.f32 %v1083, %v1057
    %v1090 = vsub.f32 %v1084, %v1058
    %v1091 = vsub.f32 %v1085, %v1059
    %v1092 = vsub.f32 %v1086, %v1060
    %v1093 = vsub.f32 %v1087, %v1061
    %v1094 = vsub.f32 %v1088, %v1062
    %v1095 = vmul.f32 %v1089, %v1033
    %v1096 = vmul.f32 %v1090, %v1034
    %v1097 = vmul.f32 %v1091, %v1035
    %v1098 = vmul.f32 %v1092, %v1036
    %v1099 = vmul.f32 %v1093, %v1037
    %v1100 = vmul.f32 %v1094, %v1038
    %v1101 = vadd.f32 %v1057, %v1095
    %v1102 = vadd.f32 %v1058, %v1096
    %v1103 = vadd.f32 %v1059, %v1097
    %v1104 = vadd.f32 %v1060, %v1098
    %v1105 = vadd.f32 %v1061, %v1099
    %v1106 = vadd.f32 %v1062, %v1100
    %s1107 = sadd.s32 16, 128
    %s1108 = scalar_lea.vmem [#allocation2], %s1107
    %v1109 = vld [vmem:[%s1108] sm:$0xff]
    %v1110 = vld [vmem:[%s1108 + $0x20] sm:$0xff]
    %v1111 = vld [vmem:[%s1108 + $0x40] sm:$0xff]
    %v1112 = vld [vmem:[%s1108 + $0x60] sm:$0xff]
    %v1113 = vld [vmem:[%s1108 + $0x100] sm:$0xff]
    %v1114 = vld [vmem:[%s1108 + $0x120] sm:$0xff]
    %v1115 = vld [vmem:[%s1108 + $0x140] sm:$0xff]
    %v1116 = vld [vmem:[%s1108 + $0x160] sm:$0xff]
    %v1117 = vand.u32 2147483647, %v1109
    %v1118 = vand.u32 2147483647, %v1110
    %v1119 = vand.u32 2147483647, %v1111
    %v1120 = vand.u32 2147483647, %v1112
    %v1121 = vand.u32 2147483647, %v1113
    %v1122 = vand.u32 2147483647, %v1114
    %v1123 = vand.u32 2147483647, %v1115
    %v1124 = vand.u32 2147483647, %v1116
    %v1125 = vsub.f32 0.0, %v1117
    %v1126 = vsub.f32 0.0, %v1118
    %v1127 = vsub.f32 0.0, %v1119
    %v1128 = vsub.f32 0.0, %v1120
    %v1129 = vsub.f32 0.0, %v1121
    %v1130 = vsub.f32 0.0, %v1122
    %v1131 = vsub.f32 0.0, %v1123
    %v1132 = vsub.f32 0.0, %v1124
    %v1133 = vmul.f32 %v1125, 1.442695
    %v1134 = vpow.pop %v1133
    %v1135 = vmul.f32 %v1126, 1.442695
    %v1136 = vpow.pop %v1135
    %v1137 = vmul.f32 %v1127, 1.442695
    %v1138 = vpow.pop %v1137
    %v1139 = vmul.f32 %v1128, 1.442695
    %v1140 = vpow.pop %v1139
    %v1141 = vmul.f32 %v1129, 1.442695
    %v1142 = vpow.pop %v1141
    %v1143 = vmul.f32 %v1130, 1.442695
    %v1144 = vpow.pop %v1143
    %v1145 = vmul.f32 %v1131, 1.442695
    %v1146 = vpow.pop %v1145
    %v1147 = vmul.f32 %v1132, 1.442695
    %v1148 = vpow.pop %v1147
    %v1149 = vadd.f32 %v1134, 1.0
    %v1150 = vlog2.pop %v1149
    %v1151 = vmul.f32 %v1150, 0.6931472
    %v1152 = vmul.f32 -0.5, %v1134
    %v1153 = vadd.f32 %v1152, 1.0
    %v1154 = vmul.f32 %v1153, %v1134
    %v1155 = vand.u32 2147483647, %v1134
    %vm1156 = vcmp.lt.f32.partialorder %v1155, 0.0004427343
    %v1157 = vsel %vm1156, %v1154, %v1151
    %v1158 = vadd.f32 %v1136, 1.0
    %v1159 = vlog2.pop %v1158
    %v1160 = vmul.f32 %v1159, 0.6931472
    %v1161 = vmul.f32 -0.5, %v1136
    %v1162 = vadd.f32 %v1161, 1.0
    %v1163 = vmul.f32 %v1162, %v1136
    %v1164 = vand.u32 2147483647, %v1136
    %vm1165 = vcmp.lt.f32.partialorder %v1164, 0.0004427343
    %v1166 = vsel %vm1165, %v1163, %v1160
    %v1167 = vadd.f32 %v1138, 1.0
    %v1168 = vlog2.pop %v1167
    %v1169 = vmul.f32 %v1168, 0.6931472
    %v1170 = vmul.f32 -0.5, %v1138
    %v1171 = vadd.f32 %v1170, 1.0
    %v1172 = vmul.f32 %v1171, %v1138
    %v1173 = vand.u32 2147483647, %v1138
    %vm1174 = vcmp.lt.f32.partialorder %v1173, 0.0004427343
    %v1175 = vsel %vm1174, %v1172, %v1169
    %v1176 = vadd.f32 %v1140, 1.0
    %v1177 = vlog2.pop %v1176
    %v1178 = vmul.f32 %v1177, 0.6931472
    %v1179 = vmul.f32 -0.5, %v1140
    %v1180 = vadd.f32 %v1179, 1.0
    %v1181 = vmul.f32 %v1180, %v1140
    %v1182 = vand.u32 2147483647, %v1140
    %vm1183 = vcmp.lt.f32.partialorder %v1182, 0.0004427343
    %v1184 = vsel %vm1183, %v1181, %v1178
    %v1185 = vadd.f32 %v1142, 1.0
    %v1186 = vlog2.pop %v1185
    %v1187 = vmul.f32 %v1186, 0.6931472
    %v1188 = vmul.f32 -0.5, %v1142
    %v1189 = vadd.f32 %v1188, 1.0
    %v1190 = vmul.f32 %v1189, %v1142
    %v1191 = vand.u32 2147483647, %v1142
    %vm1192 = vcmp.lt.f32.partialorder %v1191, 0.0004427343
    %v1193 = vsel %vm1192, %v1190, %v1187
    %v1194 = vadd.f32 %v1144, 1.0
    %v1195 = vlog2.pop %v1194
    %v1196 = vmul.f32 %v1195, 0.6931472
    %v1197 = vmul.f32 -0.5, %v1144
    %v1198 = vadd.f32 %v1197, 1.0
    %v1199 = vmul.f32 %v1198, %v1144
    %v1200 = vand.u32 2147483647, %v1144
    %vm1201 = vcmp.lt.f32.partialorder %v1200, 0.0004427343
    %v1202 = vsel %vm1201, %v1199, %v1196
    %v1203 = vadd.f32 %v1146, 1.0
    %v1204 = vlog2.pop %v1203
    %v1205 = vmul.f32 %v1204, 0.6931472
    %v1206 = vmul.f32 -0.5, %v1146
    %v1207 = vadd.f32 %v1206, 1.0
    %v1208 = vmul.f32 %v1207, %v1146
    %v1209 = vand.u32 2147483647, %v1146
    %vm1210 = vcmp.lt.f32.partialorder %v1209, 0.0004427343
    %v1211 = vsel %vm1210, %v1208, %v1205
    %v1212 = vadd.f32 %v1148, 1.0
    %v1213 = vlog2.pop %v1212
    %v1214 = vmul.f32 %v1213, 0.6931472
    %v1215 = vmul.f32 -0.5, %v1148
    %v1216 = vadd.f32 %v1215, 1.0
    %v1217 = vmul.f32 %v1216, %v1148
    %v1218 = vand.u32 2147483647, %v1148
    %vm1219 = vcmp.lt.f32.partialorder %v1218, 0.0004427343
    %v1220 = vsel %vm1219, %v1217, %v1214
    %v1221 = vmax.f32 %v1109, 0.0
    %v1222 = vmax.f32 %v1110, 0.0
    %v1223 = vmax.f32 %v1111, 0.0
    %v1224 = vmax.f32 %v1112, 0.0
    %v1225 = vmax.f32 %v1113, 0.0
    %v1226 = vmax.f32 %v1114, 0.0
    %v1227 = vmax.f32 %v1115, 0.0
    %v1228 = vmax.f32 %v1116, 0.0
    %v1229 = vmul.f32 %v1109, %v875
    %v1230 = vmul.f32 %v1110, %v876
    %v1231 = vmul.f32 %v1111, %v877
    %v1232 = vmul.f32 %v1112, %v878
    %v1233 = vmul.f32 %v1113, %v879
    %v1234 = vmul.f32 %v1114, %v880
    %v1235 = vmul.f32 %v1115, %v881
    %v1236 = vmul.f32 %v1116, %v882
    %v1237 = vsub.f32 %v1221, %v1229
    %v1238 = vsub.f32 %v1222, %v1230
    %v1239 = vsub.f32 %v1223, %v1231
    %v1240 = vsub.f32 %v1224, %v1232
    %v1241 = vsub.f32 %v1225, %v1233
    %v1242 = vsub.f32 %v1226, %v1234
    %v1243 = vsub.f32 %v1227, %v1235
    %v1244 = vsub.f32 %v1228, %v1236
    %v1245 = vadd.f32 %v1237, %v1157
    %v1246 = vadd.f32 %v1238, %v1166
    %v1247 = vadd.f32 %v1239, %v1175
    %v1248 = vadd.f32 %v1240, %v1184
    %v1249 = vadd.f32 %v1241, %v1193
    %v1250 = vadd.f32 %v1242, %v1202
    %v1251 = vadd.f32 %v1243, %v1211
    %v1252 = vadd.f32 %v1244, %v1220
    %v1253 = vadd.f32 %v921, %v922
    %v1254 = vadd.f32 %v850, %v1253
    %v1255 = vadd.f32 %v1245, %v1246
    %v1256 = vadd.f32 %v1255, %v1247
    %v1257 = vadd.f32 %v1256, %v1248
    %v1258 = vadd.f32 %v1257, %v1249
    %v1259 = vadd.f32 %v1258, %v1250
    %v1260 = vadd.f32 %v1259, %v1251
    %v1261 = vadd.f32 %v1260, %v1252
    %v1262 = vadd.f32 %v858, %v1261
    %v1263 = vadd.f32 %v1101, %v1102
    %v1264 = vadd.f32 %v1263, %v1103
    %v1265 = vadd.f32 %v1264, %v1104
    %v1266 = vadd.f32 %v1265, %v1105
    %v1267 = vadd.f32 %v1266, %v1106
    %v1268 = vadd.f32 %v864, %v1267
    %s1269 = scalar_lea.vmem [#allocation2], 24
    %v1270 = vld [vmem:[%s1269] sm:$0xff]
    %v1271 = vld [vmem:[%s1269 + $0x20] sm:$0xff]
    %v1272 = vld [vmem:[%s1269 + $0x40] sm:$0xff]
    %v1273 = vld [vmem:[%s1269 + $0x60] sm:$0xff]
    %v1274 = vld [vmem:[%s1269 + $0x100] sm:$0xff]
    %v1275 = vld [vmem:[%s1269 + $0x120] sm:$0xff]
    %v1276 = vld [vmem:[%s1269 + $0x140] sm:$0xff]
    %v1277 = vld [vmem:[%s1269 + $0x160] sm:$0xff]
    %s1278 = scalar_lea.vmem [#allocation5], 24
    %v1279 = vld [vmem:[%s1278] sm:$0xff]
    %v1280 = vld [vmem:[%s1278 + $0x20] sm:$0xff]
    %v1281 = vld [vmem:[%s1278 + $0x40] sm:$0xff]
    %v1282 = vld [vmem:[%s1278 + $0x60] sm:$0xff]
    %v1283 = vld [vmem:[%s1278 + $0x80] sm:$0xff]
    %v1284 = vld [vmem:[%s1278 + $0xa0] sm:$0xff]
    %v1285 = vld [vmem:[%s1278 + $0xc0] sm:$0xff]
    %v1286 = vld [vmem:[%s1278 + $0xe0] sm:$0xff]
    %v1287 = vmin.f32 %v1272, %v1281
    %v1288 = vmin.f32 %v1276, %v1285
    %v1289 = vmax.f32 %v1270, %v1279
    %v1290 = vmax.f32 %v1274, %v1283
    %v1291 = vsub.f32 %v1287, %v1289
    %v1292 = vsub.f32 %v1288, %v1290
    %v1293 = vmax.f32 %v1291, 0.0
    %v1294 = vmax.f32 %v1292, 0.0
    %v1295 = vmin.f32 %v1273, %v1282
    %v1296 = vmin.f32 %v1277, %v1286
    %v1297 = vmax.f32 %v1271, %v1280
    %v1298 = vmax.f32 %v1275, %v1284
    %v1299 = vsub.f32 %v1295, %v1297
    %v1300 = vsub.f32 %v1296, %v1298
    %v1301 = vmax.f32 %v1299, 0.0
    %v1302 = vmax.f32 %v1300, 0.0
    %v1303 = vmul.f32 %v1293, %v1301
    %v1304 = vmul.f32 %v1294, %v1302
    %v1305 = vsub.f32 %v1272, %v1270
    %v1306 = vsub.f32 %v1276, %v1274
    %v1307 = vsub.f32 %v1273, %v1271
    %v1308 = vsub.f32 %v1277, %v1275
    %v1309 = vmul.f32 %v1305, %v1307
    %v1310 = vmul.f32 %v1306, %v1308
    %v1311 = vsub.f32 %v1281, %v1279
    %v1312 = vsub.f32 %v1285, %v1283
    %v1313 = vsub.f32 %v1282, %v1280
    %v1314 = vsub.f32 %v1286, %v1284
    %v1315 = vmul.f32 %v1311, %v1313
    %v1316 = vmul.f32 %v1312, %v1314
    %v1317 = vadd.f32 %v1309, %v1315
    %v1318 = vadd.f32 %v1310, %v1316
    %v1319 = vsub.f32 %v1317, %v1303
    %v1320 = vsub.f32 %v1318, %v1304
    %v1321 = vadd.f32 %v1319, 1e-07
    %v1322 = vadd.f32 %v1320, 1e-07
    %v1323 = vrcp.pop %v1321
    %v1324 = vrcp.pop %v1322
    %v1325 = vmul.f32 %v1303, %v1323
    %v1326 = vmul.f32 %v1304, %v1324
    %v1327 = vand.u32 2147483647, %v1270
    %v1328 = vand.u32 2147483647, %v1271
    %v1329 = vand.u32 2147483647, %v1272
    %v1330 = vand.u32 2147483647, %v1273
    %v1331 = vand.u32 2147483647, %v1274
    %v1332 = vand.u32 2147483647, %v1275
    %v1333 = vand.u32 2147483647, %v1276
    %v1334 = vand.u32 2147483647, %v1277
    %v1335 = vsub.f32 0.0, %v1327
    %v1336 = vsub.f32 0.0, %v1328
    %v1337 = vsub.f32 0.0, %v1329
    %v1338 = vsub.f32 0.0, %v1330
    %v1339 = vsub.f32 0.0, %v1331
    %v1340 = vsub.f32 0.0, %v1332
    %v1341 = vsub.f32 0.0, %v1333
    %v1342 = vsub.f32 0.0, %v1334
    %v1343 = vmul.f32 %v1335, 1.442695
    %v1344 = vpow.pop %v1343
    %v1345 = vmul.f32 %v1336, 1.442695
    %v1346 = vpow.pop %v1345
    %v1347 = vmul.f32 %v1337, 1.442695
    %v1348 = vpow.pop %v1347
    %v1349 = vmul.f32 %v1338, 1.442695
    %v1350 = vpow.pop %v1349
    %v1351 = vmul.f32 %v1339, 1.442695
    %v1352 = vpow.pop %v1351
    %v1353 = vmul.f32 %v1340, 1.442695
    %v1354 = vpow.pop %v1353
    %v1355 = vmul.f32 %v1341, 1.442695
    %v1356 = vpow.pop %v1355
    %v1357 = vmul.f32 %v1342, 1.442695
    %v1358 = vpow.pop %v1357
    %v1359 = vadd.f32 %v1344, 1.0
    %v1360 = vlog2.pop %v1359
    %v1361 = vmul.f32 %v1360, 0.6931472
    %v1362 = vmul.f32 -0.5, %v1344
    %v1363 = vadd.f32 %v1362, 1.0
    %v1364 = vmul.f32 %v1363, %v1344
    %v1365 = vand.u32 2147483647, %v1344
    %vm1366 = vcmp.lt.f32.partialorder %v1365, 0.0004427343
    %v1367 = vsel %vm1366, %v1364, %v1361
    %v1368 = vadd.f32 %v1346, 1.0
    %v1369 = vlog2.pop %v1368
    %v1370 = vmul.f32 %v1369, 0.6931472
    %v1371 = vmul.f32 -0.5, %v1346
    %v1372 = vadd.f32 %v1371, 1.0
    %v1373 = vmul.f32 %v1372, %v1346
    %v1374 = vand.u32 2147483647, %v1346
    %vm1375 = vcmp.lt.f32.partialorder %v1374, 0.0004427343
    %v1376 = vsel %vm1375, %v1373, %v1370
    %v1377 = vadd.f32 %v1348, 1.0
    %v1378 = vlog2.pop %v1377
    %v1379 = vmul.f32 %v1378, 0.6931472
    %v1380 = vmul.f32 -0.5, %v1348
    %v1381 = vadd.f32 %v1380, 1.0
    %v1382 = vmul.f32 %v1381, %v1348
    %v1383 = vand.u32 2147483647, %v1348
    %vm1384 = vcmp.lt.f32.partialorder %v1383, 0.0004427343
    %v1385 = vsel %vm1384, %v1382, %v1379
    %v1386 = vadd.f32 %v1350, 1.0
    %v1387 = vlog2.pop %v1386
    %v1388 = vmul.f32 %v1387, 0.6931472
    %v1389 = vmul.f32 -0.5, %v1350
    %v1390 = vadd.f32 %v1389, 1.0
    %v1391 = vmul.f32 %v1390, %v1350
    %v1392 = vand.u32 2147483647, %v1350
    %vm1393 = vcmp.lt.f32.partialorder %v1392, 0.0004427343
    %v1394 = vsel %vm1393, %v1391, %v1388
    %v1395 = vadd.f32 %v1352, 1.0
    %v1396 = vlog2.pop %v1395
    %v1397 = vmul.f32 %v1396, 0.6931472
    %v1398 = vmul.f32 -0.5, %v1352
    %v1399 = vadd.f32 %v1398, 1.0
    %v1400 = vmul.f32 %v1399, %v1352
    %v1401 = vand.u32 2147483647, %v1352
    %vm1402 = vcmp.lt.f32.partialorder %v1401, 0.0004427343
    %v1403 = vsel %vm1402, %v1400, %v1397
    %v1404 = vadd.f32 %v1354, 1.0
    %v1405 = vlog2.pop %v1404
    %v1406 = vmul.f32 %v1405, 0.6931472
    %v1407 = vmul.f32 -0.5, %v1354
    %v1408 = vadd.f32 %v1407, 1.0
    %v1409 = vmul.f32 %v1408, %v1354
    %v1410 = vand.u32 2147483647, %v1354
    %vm1411 = vcmp.lt.f32.partialorder %v1410, 0.0004427343
    %v1412 = vsel %vm1411, %v1409, %v1406
    %v1413 = vadd.f32 %v1356, 1.0
    %v1414 = vlog2.pop %v1413
    %v1415 = vmul.f32 %v1414, 0.6931472
    %v1416 = vmul.f32 -0.5, %v1356
    %v1417 = vadd.f32 %v1416, 1.0
    %v1418 = vmul.f32 %v1417, %v1356
    %v1419 = vand.u32 2147483647, %v1356
    %vm1420 = vcmp.lt.f32.partialorder %v1419, 0.0004427343
    %v1421 = vsel %vm1420, %v1418, %v1415
    %v1422 = vadd.f32 %v1358, 1.0
    %v1423 = vlog2.pop %v1422
    %v1424 = vmul.f32 %v1423, 0.6931472
    %v1425 = vmul.f32 -0.5, %v1358
    %v1426 = vadd.f32 %v1425, 1.0
    %v1427 = vmul.f32 %v1426, %v1358
    %v1428 = vand.u32 2147483647, %v1358
    %vm1429 = vcmp.lt.f32.partialorder %v1428, 0.0004427343
    %v1430 = vsel %vm1429, %v1427, %v1424
    %v1431 = vfloor.f32 %v1279
    %v1432 = vfloor.f32 %v1280
    %v1433 = vfloor.f32 %v1281
    %v1434 = vfloor.f32 %v1283
    %v1435 = vfloor.f32 %v1284
    %v1436 = vfloor.f32 %v1285
    %v1437 = vsub.f32 %v1279, %v1431
    %v1438 = vsub.f32 %v1280, %v1432
    %v1439 = vsub.f32 %v1281, %v1433
    %v1440 = vsub.f32 %v1283, %v1434
    %v1441 = vsub.f32 %v1284, %v1435
    %v1442 = vsub.f32 %v1285, %v1436
    %v1443 = vmax.f32 %v1270, 0.0
    %v1444 = vmax.f32 %v1271, 0.0
    %v1445 = vmax.f32 %v1272, 0.0
    %v1446 = vmax.f32 %v1274, 0.0
    %v1447 = vmax.f32 %v1275, 0.0
    %v1448 = vmax.f32 %v1276, 0.0
    %v1449 = vmul.f32 %v1270, %v1431
    %v1450 = vmul.f32 %v1271, %v1432
    %v1451 = vmul.f32 %v1272, %v1433
    %v1452 = vmul.f32 %v1274, %v1434
    %v1453 = vmul.f32 %v1275, %v1435
    %v1454 = vmul.f32 %v1276, %v1436
    %v1455 = vsub.f32 %v1443, %v1449
    %v1456 = vsub.f32 %v1444, %v1450
    %v1457 = vsub.f32 %v1445, %v1451
    %v1458 = vsub.f32 %v1446, %v1452
    %v1459 = vsub.f32 %v1447, %v1453
    %v1460 = vsub.f32 %v1448, %v1454
    %v1461 = vadd.f32 %v1455, %v1367
    %v1462 = vadd.f32 %v1456, %v1376
    %v1463 = vadd.f32 %v1457, %v1385
    %v1464 = vadd.f32 %v1458, %v1403
    %v1465 = vadd.f32 %v1459, %v1412
    %v1466 = vadd.f32 %v1460, %v1421
    %v1467 = vmax.f32 %v1273, 0.0
    %v1468 = vmax.f32 %v1277, 0.0
    %v1469 = vmul.f32 %v1271, %v1431
    %v1470 = vmul.f32 %v1272, %v1432
    %v1471 = vmul.f32 %v1273, %v1433
    %v1472 = vmul.f32 %v1275, %v1434
    %v1473 = vmul.f32 %v1276, %v1435
    %v1474 = vmul.f32 %v1277, %v1436
    %v1475 = vsub.f32 %v1444, %v1469
    %v1476 = vsub.f32 %v1445, %v1470
    %v1477 = vsub.f32 %v1467, %v1471
    %v1478 = vsub.f32 %v1447, %v1472
    %v1479 = vsub.f32 %v1448, %v1473
    %v1480 = vsub.f32 %v1468, %v1474
    %v1481 = vsub.f32 %v1475, %v1271
    %v1482 = vsub.f32 %v1476, %v1272
    %v1483 = vsub.f32 %v1477, %v1273
    %v1484 = vsub.f32 %v1478, %v1275
    %v1485 = vsub.f32 %v1479, %v1276
    %v1486 = vsub.f32 %v1480, %v1277
    %v1487 = vadd.f32 %v1481, %v1376
    %v1488 = vadd.f32 %v1482, %v1385
    %v1489 = vadd.f32 %v1483, %v1394
    %v1490 = vadd.f32 %v1484, %v1412
    %v1491 = vadd.f32 %v1485, %v1421
    %v1492 = vadd.f32 %v1486, %v1430
    %v1493 = vsub.f32 %v1487, %v1461
    %v1494 = vsub.f32 %v1488, %v1462
    %v1495 = vsub.f32 %v1489, %v1463
    %v1496 = vsub.f32 %v1490, %v1464
    %v1497 = vsub.f32 %v1491, %v1465
    %v1498 = vsub.f32 %v1492, %v1466
    %v1499 = vmul.f32 %v1493, %v1437
    %v1500 = vmul.f32 %v1494, %v1438
    %v1501 = vmul.f32 %v1495, %v1439
    %v1502 = vmul.f32 %v1496, %v1440
    %v1503 = vmul.f32 %v1497, %v1441
    %v1504 = vmul.f32 %v1498, %v1442
    %v1505 = vadd.f32 %v1461, %v1499
    %v1506 = vadd.f32 %v1462, %v1500
    %v1507 = vadd.f32 %v1463, %v1501
    %v1508 = vadd.f32 %v1464, %v1502
    %v1509 = vadd.f32 %v1465, %v1503
    %v1510 = vadd.f32 %v1466, %v1504
    %s1511 = sadd.s32 24, 128
    %s1512 = scalar_lea.vmem [#allocation2], %s1511
    %v1513 = vld [vmem:[%s1512] sm:$0xff]
    %v1514 = vld [vmem:[%s1512 + $0x20] sm:$0xff]
    %v1515 = vld [vmem:[%s1512 + $0x40] sm:$0xff]
    %v1516 = vld [vmem:[%s1512 + $0x60] sm:$0xff]
    %v1517 = vld [vmem:[%s1512 + $0x100] sm:$0xff]
    %v1518 = vld [vmem:[%s1512 + $0x120] sm:$0xff]
    %v1519 = vld [vmem:[%s1512 + $0x140] sm:$0xff]
    %v1520 = vld [vmem:[%s1512 + $0x160] sm:$0xff]
    %v1521 = vand.u32 2147483647, %v1513
    %v1522 = vand.u32 2147483647, %v1514
    %v1523 = vand.u32 2147483647, %v1515
    %v1524 = vand.u32 2147483647, %v1516
    %v1525 = vand.u32 2147483647, %v1517
    %v1526 = vand.u32 2147483647, %v1518
    %v1527 = vand.u32 2147483647, %v1519
    %v1528 = vand.u32 2147483647, %v1520
    %v1529 = vsub.f32 0.0, %v1521
    %v1530 = vsub.f32 0.0, %v1522
    %v1531 = vsub.f32 0.0, %v1523
    %v1532 = vsub.f32 0.0, %v1524
    %v1533 = vsub.f32 0.0, %v1525
    %v1534 = vsub.f32 0.0, %v1526
    %v1535 = vsub.f32 0.0, %v1527
    %v1536 = vsub.f32 0.0, %v1528
    %v1537 = vmul.f32 %v1529, 1.442695
    %v1538 = vpow.pop %v1537
    %v1539 = vmul.f32 %v1530, 1.442695
    %v1540 = vpow.pop %v1539
    %v1541 = vmul.f32 %v1531, 1.442695
    %v1542 = vpow.pop %v1541
    %v1543 = vmul.f32 %v1532, 1.442695
    %v1544 = vpow.pop %v1543
    %v1545 = vmul.f32 %v1533, 1.442695
    %v1546 = vpow.pop %v1545
    %v1547 = vmul.f32 %v1534, 1.442695
    %v1548 = vpow.pop %v1547
    %v1549 = vmul.f32 %v1535, 1.442695
    %v1550 = vpow.pop %v1549
    %v1551 = vmul.f32 %v1536, 1.442695
    %v1552 = vpow.pop %v1551
    %v1553 = vadd.f32 %v1538, 1.0
    %v1554 = vlog2.pop %v1553
    %v1555 = vmul.f32 %v1554, 0.6931472
    %v1556 = vmul.f32 -0.5, %v1538
    %v1557 = vadd.f32 %v1556, 1.0
    %v1558 = vmul.f32 %v1557, %v1538
    %v1559 = vand.u32 2147483647, %v1538
    %vm1560 = vcmp.lt.f32.partialorder %v1559, 0.0004427343
    %v1561 = vsel %vm1560, %v1558, %v1555
    %v1562 = vadd.f32 %v1540, 1.0
    %v1563 = vlog2.pop %v1562
    %v1564 = vmul.f32 %v1563, 0.6931472
    %v1565 = vmul.f32 -0.5, %v1540
    %v1566 = vadd.f32 %v1565, 1.0
    %v1567 = vmul.f32 %v1566, %v1540
    %v1568 = vand.u32 2147483647, %v1540
    %vm1569 = vcmp.lt.f32.partialorder %v1568, 0.0004427343
    %v1570 = vsel %vm1569, %v1567, %v1564
    %v1571 = vadd.f32 %v1542, 1.0
    %v1572 = vlog2.pop %v1571
    %v1573 = vmul.f32 %v1572, 0.6931472
    %v1574 = vmul.f32 -0.5, %v1542
    %v1575 = vadd.f32 %v1574, 1.0
    %v1576 = vmul.f32 %v1575, %v1542
    %v1577 = vand.u32 2147483647, %v1542
    %vm1578 = vcmp.lt.f32.partialorder %v1577, 0.0004427343
    %v1579 = vsel %vm1578, %v1576, %v1573
    %v1580 = vadd.f32 %v1544, 1.0
    %v1581 = vlog2.pop %v1580
    %v1582 = vmul.f32 %v1581, 0.6931472
    %v1583 = vmul.f32 -0.5, %v1544
    %v1584 = vadd.f32 %v1583, 1.0
    %v1585 = vmul.f32 %v1584, %v1544
    %v1586 = vand.u32 2147483647, %v1544
    %vm1587 = vcmp.lt.f32.partialorder %v1586, 0.0004427343
    %v1588 = vsel %vm1587, %v1585, %v1582
    %v1589 = vadd.f32 %v1546, 1.0
    %v1590 = vlog2.pop %v1589
    %v1591 = vmul.f32 %v1590, 0.6931472
    %v1592 = vmul.f32 -0.5, %v1546
    %v1593 = vadd.f32 %v1592, 1.0
    %v1594 = vmul.f32 %v1593, %v1546
    %v1595 = vand.u32 2147483647, %v1546
    %vm1596 = vcmp.lt.f32.partialorder %v1595, 0.0004427343
    %v1597 = vsel %vm1596, %v1594, %v1591
    %v1598 = vadd.f32 %v1548, 1.0
    %v1599 = vlog2.pop %v1598
    %v1600 = vmul.f32 %v1599, 0.6931472
    %v1601 = vmul.f32 -0.5, %v1548
    %v1602 = vadd.f32 %v1601, 1.0
    %v1603 = vmul.f32 %v1602, %v1548
    %v1604 = vand.u32 2147483647, %v1548
    %vm1605 = vcmp.lt.f32.partialorder %v1604, 0.0004427343
    %v1606 = vsel %vm1605, %v1603, %v1600
    %v1607 = vadd.f32 %v1550, 1.0
    %v1608 = vlog2.pop %v1607
    %v1609 = vmul.f32 %v1608, 0.6931472
    %v1610 = vmul.f32 -0.5, %v1550
    %v1611 = vadd.f32 %v1610, 1.0
    %v1612 = vmul.f32 %v1611, %v1550
    %v1613 = vand.u32 2147483647, %v1550
    %vm1614 = vcmp.lt.f32.partialorder %v1613, 0.0004427343
    %v1615 = vsel %vm1614, %v1612, %v1609
    %v1616 = vadd.f32 %v1552, 1.0
    %v1617 = vlog2.pop %v1616
    %v1618 = vmul.f32 %v1617, 0.6931472
    %v1619 = vmul.f32 -0.5, %v1552
    %v1620 = vadd.f32 %v1619, 1.0
    %v1621 = vmul.f32 %v1620, %v1552
    %v1622 = vand.u32 2147483647, %v1552
    %vm1623 = vcmp.lt.f32.partialorder %v1622, 0.0004427343
    %v1624 = vsel %vm1623, %v1621, %v1618
    %v1625 = vmax.f32 %v1513, 0.0
    %v1626 = vmax.f32 %v1514, 0.0
    %v1627 = vmax.f32 %v1515, 0.0
    %v1628 = vmax.f32 %v1516, 0.0
    %v1629 = vmax.f32 %v1517, 0.0
    %v1630 = vmax.f32 %v1518, 0.0
    %v1631 = vmax.f32 %v1519, 0.0
    %v1632 = vmax.f32 %v1520, 0.0
    %v1633 = vmul.f32 %v1513, %v1279
    %v1634 = vmul.f32 %v1514, %v1280
    %v1635 = vmul.f32 %v1515, %v1281
    %v1636 = vmul.f32 %v1516, %v1282
    %v1637 = vmul.f32 %v1517, %v1283
    %v1638 = vmul.f32 %v1518, %v1284
    %v1639 = vmul.f32 %v1519, %v1285
    %v1640 = vmul.f32 %v1520, %v1286
    %v1641 = vsub.f32 %v1625, %v1633
    %v1642 = vsub.f32 %v1626, %v1634
    %v1643 = vsub.f32 %v1627, %v1635
    %v1644 = vsub.f32 %v1628, %v1636
    %v1645 = vsub.f32 %v1629, %v1637
    %v1646 = vsub.f32 %v1630, %v1638
    %v1647 = vsub.f32 %v1631, %v1639
    %v1648 = vsub.f32 %v1632, %v1640
    %v1649 = vadd.f32 %v1641, %v1561
    %v1650 = vadd.f32 %v1642, %v1570
    %v1651 = vadd.f32 %v1643, %v1579
    %v1652 = vadd.f32 %v1644, %v1588
    %v1653 = vadd.f32 %v1645, %v1597
    %v1654 = vadd.f32 %v1646, %v1606
    %v1655 = vadd.f32 %v1647, %v1615
    %v1656 = vadd.f32 %v1648, %v1624
    %v1657 = vadd.f32 %v1325, %v1326
    %v1658 = vadd.f32 %v1254, %v1657
    %v1659 = vadd.f32 %v1649, %v1650
    %v1660 = vadd.f32 %v1659, %v1651
    %v1661 = vadd.f32 %v1660, %v1652
    %v1662 = vadd.f32 %v1661, %v1653
    %v1663 = vadd.f32 %v1662, %v1654
    %v1664 = vadd.f32 %v1663, %v1655
    %v1665 = vadd.f32 %v1664, %v1656
    %v1666 = vadd.f32 %v1262, %v1665
    %v1667 = vadd.f32 %v1505, %v1506
    %v1668 = vadd.f32 %v1667, %v1507
    %v1669 = vadd.f32 %v1668, %v1508
    %v1670 = vadd.f32 %v1669, %v1509
    %v1671 = vadd.f32 %v1670, %v1510
    %v1672 = vadd.f32 %v1268, %v1671
    %v1673 = vld [vmem:[#allocation7] sm:$0xff]
    %v1674 = vadd.f32 %v1673, %v1658
    %1675 = vst [vmem:[#allocation7] sm:$0xff] %v1674
    %s1676 = scalar_lea.vmem [#allocation7], 8
    %v1677 = vld [vmem:[%s1676] sm:$0xff]
    %v1678 = vadd.f32 %v1677, %v1666
    %1679 = vst [vmem:[%s1676] sm:$0xff] %v1678
    %s1680 = scalar_lea.vmem [#allocation7], 16
    %v1681 = vld [vmem:[%s1680] sm:$0xff]
    %v1682 = vadd.f32 %v1681, %v1672
    %1683 = vst [vmem:[%s1680] sm:$0xff] %v1682
    // Predicated region
    $region22: #{tpu_custom_call.1} parent=1 // pred_check
      _
    $region23: #{tpu_custom_call.1} parent=1 // pred_check_branch
      %1685 = sbr.rel (0) target = $region25
    $region24: #{tpu_custom_call.1} parent=1 // pred_region
      %s1687 = ssub.s32 384, 384
      %1688 = vsyncadd [#allocation4], %s1687
      %s1689 = sshll.u32 [#allocation7], 4
      %s1690 = int_to_ptr.vmem [resolvable:$true] %s1689
      %1695 = dma.vmem_to_hbm [thread:$0]  %s1690, 384, %s2, [#allocation4], 128, 128, 8
    $region25: #{tpu_custom_call.1} parent=1 // pred_fallthru
      _
    // Predicated region
    $region26: #{tpu_custom_call.1} parent=1 // pred_check
      _
    $region27: #{tpu_custom_call.1} parent=1 // pred_check_branch
      %1697 = sbr.rel (0) target = $region29
    $region28: #{tpu_custom_call.1} parent=1 // pred_region
      %1698 = dma.done [#allocation4], 384
    $region29: #{tpu_custom_call.1} parent=1 // pred_fallthru
      _
    %1699 = vsyncpa [#allocation3], 1
    %1700 = vsyncpa [#allocation6], 1
    %1701 = vsyncpa [#allocation4], 1

</llo_original>
